<compile_context>
chip_gen: v5e
topology: v5e:2x2
jax: 0.10.0
libtpu: 0.0.40
codegen_flags: <defaults>
</compile_context>

<pallas_src>
import jax
import jax.numpy as jnp
from jax.experimental import pallas as pl
from jax.experimental.pallas import tpu as pltpu

_LANE = 128


def _round_up(v, m):
    return (v + m - 1) // m * m


def _gcn_layer1_kernel(adj_ref, s1_ref, w2_ref, s2_ref):
    # h_tile = relu(adj_tile @ support1): bf16 MXU inputs, f32 accumulation.
    h = jnp.dot(adj_ref[...], s1_ref[...], preferred_element_type=jnp.float32)
    h = jnp.maximum(h, 0.0)                       # fused ReLU (f32, VPU)
    # Fused second projection: s2_tile = h_tile @ W2 (H never leaves the tile).
    s2 = jnp.dot(h.astype(w2_ref.dtype), w2_ref[...],
                 preferred_element_type=jnp.float32)
    s2_ref[...] = s2.astype(s2_ref.dtype)


def _gcn_layer2_kernel(adj_ref, s2_ref, out_ref):
    acc = jnp.dot(adj_ref[...], s2_ref[...], preferred_element_type=jnp.float32)
    out_ref[...] = jnp.maximum(acc, 0.0).astype(out_ref.dtype)


def _vmem_limit(*buffer_bytes):
    need = sum(buffer_bytes)
    # Headroom over the explicit buffers; clamp to stay sane on v7x (64 MiB).
    return max(16 << 20, min(int(need * 1.5) + (2 << 20), 64 << 20))


def gcn_forward(x, adj, w1, w2, *, row_tile=256):
    """relu(A @ relu(A @ (X @ W1)) @ W2) with streamed adjacency row tiles."""
    n, f_in = x.shape
    f_hid = w1.shape[1]
    f_out = w2.shape[1]
    bf16 = jnp.bfloat16

    f_hid_pad = _round_up(f_hid, _LANE)
    f_out_pad = _round_up(f_out, _LANE)

    # Row tile is a multiple of 128 -> lane-dense adjacency blocks, unmasked
    # stores, sublane dims always multiples of 16 (bf16-safe).
    tm = min(_round_up(row_tile, _LANE), _round_up(n, _LANE))
    n_pad = _round_up(n, tm)
    n_tiles = n_pad // tm

    # --- hoisted out of the kernel: support1 = X @ W1 (plain XLA matmul) ----
    s1 = jnp.dot(x.astype(bf16), w1.astype(bf16),
                 preferred_element_type=jnp.float32)
    s1_p = jnp.zeros((n_pad, f_hid_pad), bf16).at[:n, :f_hid].set(
        s1.astype(bf16))

    adj_p = jnp.zeros((n_pad, n_pad), bf16).at[:n, :n].set(adj.astype(bf16))
    w2_p = jnp.zeros((f_hid_pad, f_out_pad), bf16).at[:f_hid, :f_out].set(
        w2.astype(bf16))

    # --- layer 1 (+ fused H @ W2): s2 = relu(A @ s1) @ W2 --------------------
    s2_p = pl.pallas_call(
        _gcn_layer1_kernel,
        out_shape=jax.ShapeDtypeStruct((n_pad, f_out_pad), bf16),
        grid=(n_tiles,),
        in_specs=[
            pl.BlockSpec((tm, n_pad), lambda i: (i, 0)),            # adj rows
            pl.BlockSpec((n_pad, f_hid_pad), lambda i: (0, 0)),     # support1
            pl.BlockSpec((f_hid_pad, f_out_pad), lambda i: (0, 0)),  # W2
        ],
        out_specs=pl.BlockSpec((tm, f_out_pad), lambda i: (i, 0)),
        compiler_params=pltpu.CompilerParams(
            dimension_semantics=("parallel",),
            vmem_limit_bytes=_vmem_limit(
                2 * tm * n_pad * 2,             # adj tiles (double-buffered)
                2 * n_pad * f_hid_pad * 2,      # resident support1
                2 * f_hid_pad * f_out_pad * 2,  # resident W2
                2 * tm * f_out_pad * 2,         # s2 output tiles
            ),
        ),
    )(adj_p, s1_p, w2_p)

    # --- layer 2: out = relu(A @ s2) -----------------------------------------
    out = pl.pallas_call(
        _gcn_layer2_kernel,
        out_shape=jax.ShapeDtypeStruct((n_pad, f_out_pad), jnp.float32),
        grid=(n_tiles,),
        in_specs=[
            pl.BlockSpec((tm, n_pad), lambda i: (i, 0)),            # adj rows
            pl.BlockSpec((n_pad, f_out_pad), lambda i: (0, 0)),     # support2
        ],
        out_specs=pl.BlockSpec((tm, f_out_pad), lambda i: (i, 0)),
        compiler_params=pltpu.CompilerParams(
            dimension_semantics=("parallel",),
            vmem_limit_bytes=_vmem_limit(
                2 * tm * n_pad * 2,
                2 * n_pad * f_out_pad * 2,
                2 * tm * f_out_pad * 4,
            ),
        ),
    )(adj_p, s2_p)

    return out[:n, :f_out]


def xavier_uniform(key, shape, gain=1.414):
    fan_in, fan_out = shape
    bound = gain * jnp.sqrt(6.0 / (fan_in + fan_out))
    return jax.random.uniform(key, shape, jnp.float32, -bound, bound)


def _reference(x, adj, w1, w2):
    # Mirrors the kernel numerics: bf16 MXU operands, f32 accumulation,
    # f32 ReLU, bf16 intermediates between matmuls.
    bf16, f32 = jnp.bfloat16, jnp.float32
    s1 = jnp.dot(x.astype(bf16), w1.astype(bf16), preferred_element_type=f32)
    h = jnp.maximum(jnp.dot(adj.astype(bf16), s1.astype(bf16),
                            preferred_element_type=f32), 0.0)
    s2 = jnp.dot(h.astype(bf16), w2.astype(bf16), preferred_element_type=f32)
    return jnp.maximum(jnp.dot(adj.astype(bf16), s2.astype(bf16),
                               preferred_element_type=f32), 0.0)


if __name__ == "__main__":
    key = jax.random.PRNGKey(0)
    k_x, k_adj, k_w1, k_w2 = jax.random.split(key, 4)

    # Small synthetic graph: 300 nodes (2 row tiles after padding),
    # 64 input features, 32 hidden, 16 output classes.
    N, F_IN, F_HID, F_OUT = 300, 64, 32, 16

    x = jax.random.normal(k_x, (N, F_IN), jnp.float32)

    # Symmetric normalized adjacency with self-loops (deterministic).
    a = (jax.random.uniform(k_adj, (N, N)) < 0.05).astype(jnp.float32)
    a = jnp.maximum(a, a.T)
    a = a + jnp.eye(N, dtype=jnp.float32)
    deg = jnp.sum(a, axis=1)
    d_inv_sqrt = 1.0 / jnp.sqrt(deg)
    adj = a * d_inv_sqrt[:, None] * d_inv_sqrt[None, :]

    w1 = xavier_uniform(k_w1, (F_IN, F_HID))
    w2 = xavier_uniform(k_w2, (F_HID, F_OUT))

    # TODO(synk): training-mode dropout between the layers would need
    # pltpu.prng_seed + pltpu.prng_random_bits; eval mode is identity.
    fwd = jax.jit(gcn_forward)
    out = jax.block_until_ready(fwd(x, adj, w1, w2))

    ref = _reference(x, adj, w1, w2)
    assert out.shape == (N, F_OUT)
    err = float(jnp.max(jnp.abs(out - ref)))
    assert jnp.allclose(out, ref, atol=1e-2, rtol=1e-2), err

    print("KERNEL_OK")
</pallas_src>

<mosaic_0001>
module attributes {stable_mosaic.version = 11 : i64} {
  func.func @_gcn_layer1_kernel(%arg0: i32, %arg1: memref<256x512xbf16, #tpu.memory_space<vmem>>, %arg2: memref<512x128xbf16, #tpu.memory_space<vmem>>, %arg3: memref<128x128xbf16, #tpu.memory_space<vmem>>, %arg4: memref<256x128xbf16, #tpu.memory_space<vmem>>) attributes {dimension_semantics = [#tpu.dimension_semantics<parallel>], iteration_bounds = array<i64: 2>, scalar_prefetch = 0 : i64, scratch_operands = 0 : i64, tpu.core_type = #tpu.core_type<tc>, window_params = [{transform_indices = @transform_0, window_bounds = array<i64: 256, 512>}, {pipeline_mode = #tpu.pipeline_mode<synchronous>, transform_indices = @transform_1, window_bounds = array<i64: 512, 128>}, {pipeline_mode = #tpu.pipeline_mode<synchronous>, transform_indices = @transform_2, window_bounds = array<i64: 128, 128>}, {transform_indices = @transform_3, window_bounds = array<i64: 256, 128>}]} {
    %c0 = arith.constant 0 : index
    %c0_0 = arith.constant 0 : index
    %0 = vector.load %arg1[%c0, %c0_0] : memref<256x512xbf16, #tpu.memory_space<vmem>>, vector<256x512xbf16>
    %c0_1 = arith.constant 0 : index
    %c0_2 = arith.constant 0 : index
    %1 = vector.load %arg2[%c0_1, %c0_2] : memref<512x128xbf16, #tpu.memory_space<vmem>>, vector<512x128xbf16>
    %cst = arith.constant dense<0.000000e+00> : vector<256x128xf32>
    %2 = tpu.matmul %0, %1, %cst {dimension_numbers = #tpu.dot_dimension_numbers<[1], [0], [0], [1], [0, 0, 1, 1], [], []>} : vector<256x512xbf16>, vector<512x128xbf16>, vector<256x128xf32> -> vector<256x128xf32>
    %cst_3 = arith.constant 0.000000e+00 : f32
    %3 = vector.broadcast %cst_3 : f32 to vector<256x128xf32>
    %4 = arith.maximumf %2, %3 : vector<256x128xf32>
    %5 = arith.truncf %4 : vector<256x128xf32> to vector<256x128xbf16>
    %c0_4 = arith.constant 0 : index
    %c0_5 = arith.constant 0 : index
    %6 = vector.load %arg3[%c0_4, %c0_5] : memref<128x128xbf16, #tpu.memory_space<vmem>>, vector<128x128xbf16>
    %cst_6 = arith.constant dense<0.000000e+00> : vector<256x128xf32>
    %7 = tpu.matmul %5, %6, %cst_6 {dimension_numbers = #tpu.dot_dimension_numbers<[1], [0], [0], [1], [0, 0, 1, 1], [], []>} : vector<256x128xbf16>, vector<128x128xbf16>, vector<256x128xf32> -> vector<256x128xf32>
    %8 = arith.truncf %7 : vector<256x128xf32> to vector<256x128xbf16>
    %c0_7 = arith.constant 0 : index
    %c0_8 = arith.constant 0 : index
    %9 = vector.load %arg4[%c0_7, %c0_8] : memref<256x128xbf16, #tpu.memory_space<vmem>>, vector<256x128xbf16>
    tpu.vector_store %arg4[%c0_7, %c0_8], %8 {strides = array<i32>} : memref<256x128xbf16, #tpu.memory_space<vmem>>, vector<256x128xbf16>,
    return
  }
  func.func @transform_0(%arg0: i32) -> (i32, i32) {
    %c0_i32 = arith.constant 0 : i32
    %c0_i32_0 = arith.constant 0 : i32
    return %arg0, %c0_i32 : i32, i32
  }
  func.func @transform_1(%arg0: i32) -> (i32, i32) {
    %c0_i32 = arith.constant 0 : i32
    %c0_i32_0 = arith.constant 0 : i32
    %c0_i32_1 = arith.constant 0 : i32
    return %c0_i32, %c0_i32_0 : i32, i32
  }
  func.func @transform_2(%arg0: i32) -> (i32, i32) {
    %c0_i32 = arith.constant 0 : i32
    %c0_i32_0 = arith.constant 0 : i32
    %c0_i32_1 = arith.constant 0 : i32
    return %c0_i32, %c0_i32_0 : i32, i32
  }
  func.func @transform_3(%arg0: i32) -> (i32, i32) {
    %c0_i32 = arith.constant 0 : i32
    %c0_i32_0 = arith.constant 0 : i32
    return %arg0, %c0_i32 : i32, i32
  }
}

module attributes {stable_mosaic.version = 11 : i64} {
  func.func @_gcn_layer2_kernel(%arg0: i32, %arg1: memref<256x512xbf16, #tpu.memory_space<vmem>>, %arg2: memref<512x128xbf16, #tpu.memory_space<vmem>>, %arg3: memref<256x128xf32, #tpu.memory_space<vmem>>) attributes {dimension_semantics = [#tpu.dimension_semantics<parallel>], iteration_bounds = array<i64: 2>, scalar_prefetch = 0 : i64, scratch_operands = 0 : i64, tpu.core_type = #tpu.core_type<tc>, window_params = [{transform_indices = @transform_0, window_bounds = array<i64: 256, 512>}, {pipeline_mode = #tpu.pipeline_mode<synchronous>, transform_indices = @transform_1, window_bounds = array<i64: 512, 128>}, {transform_indices = @transform_2, window_bounds = array<i64: 256, 128>}]} {
    %c0 = arith.constant 0 : index
    %c0_0 = arith.constant 0 : index
    %0 = vector.load %arg1[%c0, %c0_0] : memref<256x512xbf16, #tpu.memory_space<vmem>>, vector<256x512xbf16>
    %c0_1 = arith.constant 0 : index
    %c0_2 = arith.constant 0 : index
    %1 = vector.load %arg2[%c0_1, %c0_2] : memref<512x128xbf16, #tpu.memory_space<vmem>>, vector<512x128xbf16>
    %cst = arith.constant dense<0.000000e+00> : vector<256x128xf32>
    %2 = tpu.matmul %0, %1, %cst {dimension_numbers = #tpu.dot_dimension_numbers<[1], [0], [0], [1], [0, 0, 1, 1], [], []>} : vector<256x512xbf16>, vector<512x128xbf16>, vector<256x128xf32> -> vector<256x128xf32>
    %cst_3 = arith.constant 0.000000e+00 : f32
    %3 = vector.broadcast %cst_3 : f32 to vector<256x128xf32>
    %4 = arith.maximumf %2, %3 : vector<256x128xf32>
    %c0_4 = arith.constant 0 : index
    %c0_5 = arith.constant 0 : index
    %5 = vector.load %arg3[%c0_4, %c0_5] : memref<256x128xf32, #tpu.memory_space<vmem>>, vector<256x128xf32>
    tpu.vector_store %arg3[%c0_4, %c0_5], %4 {strides = array<i32>} : memref<256x128xf32, #tpu.memory_space<vmem>>, vector<256x128xf32>,
    return
  }
  func.func @transform_0(%arg0: i32) -> (i32, i32) {
    %c0_i32 = arith.constant 0 : i32
    %c0_i32_0 = arith.constant 0 : i32
    return %arg0, %c0_i32 : i32, i32
  }
  func.func @transform_1(%arg0: i32) -> (i32, i32) {
    %c0_i32 = arith.constant 0 : i32
    %c0_i32_0 = arith.constant 0 : i32
    %c0_i32_1 = arith.constant 0 : i32
    return %c0_i32, %c0_i32_0 : i32, i32
  }
  func.func @transform_2(%arg0: i32) -> (i32, i32) {
    %c0_i32 = arith.constant 0 : i32
    %c0_i32_0 = arith.constant 0 : i32
    return %arg0, %c0_i32 : i32, i32
  }
}

</mosaic_0001>

<llo_original>
// kernel: gcn_forward.3
$region0: #{gcn_forward.3}
  #allocation0 [shape = 'u32[]', space=smem, size = 0x4, offset = 0x4, fixed_abs, tag = 'smem constant byte address 0x4 - core index']
  #allocation1 [shape = 'u32[72,128]{1,0:T(1,128)}', space=vmem, size = 0x9000, scoped, tag = 'internal scratch']
  %s0 = inlined_call_operand.vmem [shape: bf16[512,512], index: 0, kind: input, shape index: {}]
  %s1 = inlined_call_operand.vmem [shape: bf16[512,128], index: 1, kind: input, shape index: {}]
  %s2 = inlined_call_operand.vmem [shape: f32[512,128], index: 2, kind: output, shape index: {}]
  %s3 = sld [smem:[#allocation0]]
  $region41: #{gcn_forward.3} parent=0
    _
  %s5 = ssub.s32 1, %s3
  %s6 = scalar_select 0, %s5, %s3
  loop: start=0, step=1, limit=4
  $region2: #{gcn_forward.3} parent=0 // loop_pre_header
    _
  $region3: #{gcn_forward.3} parent=0 // loop_header
    %s8 = sphi 0, %s12
    %p9 = scmp.ge.s32.totalorder %s8, 4
    %s18 = sphi 0, %s20
    %s21 = sphi 0, %s18
    %s22 = sphi 0, %s21
    %s38 = sphi 0, %s22
    %s42 = sphi 0, %s42
    %s44 = sphi 0, %s42
    %s45 = sphi 0, %s44
    %s59 = sphi 0, %s45
    %s65 = sphi 0, %s67
    %s68 = sphi 0, %s65
    %s69 = sphi 0, %s68
    %s85 = sphi 0, %s69
  $region4: #{gcn_forward.3} parent=0 // loop_header_branch
    %11 = sbr.rel (%p9) target = $region8
  $region5: #{gcn_forward.3} parent=0 // loop_body
    %s13 = ssub.s32 %s8, 1
    %s14 = ssub.s32 %s8, 2
    %s15 = sadd.s32 %s8, 1
    %s16 = ssub.s32 %s8, %s15
    %p17 = scmp.eq.s32.totalorder %s16, 0
    %s19 = sadd.s32 %s18, 1
    %s20 = scalar_select %p17, %s18, %s19
    %p23 = pneg %p17
    %p24 = scmp.eq.s32.totalorder %s8, 1
    %p25 = por %p23, %p24
    %p26 = scmp.ne.s32.totalorder %s18, %s21
    %p27 = scmp.eq.s32.totalorder %s8, 0
    %p28 = por %p26, %p27
    %p29 = scmp.ne.s32.totalorder %s18, %s21
    %p30 = scmp.eq.s32.totalorder %s13, 1
    %p31 = por %p29, %p30
    %p32 = scmp.ne.s32.totalorder %s21, %s22
    %p33 = scmp.eq.s32.totalorder %s13, 0
    %p34 = por %p32, %p33
    %p35 = scmp.ne.s32.totalorder %s21, %s22
    %p36 = scmp.eq.s32.totalorder %s14, 1
    %p37 = por %p35, %p36
    %p39 = scmp.ne.s32.totalorder %s22, %s38
    %p40 = scmp.eq.s32.totalorder %s14, 0
    %p41 = por %p39, %p40
    %s43 = sadd.s32 %s42, 1
    %p46 = scmp.eq.s32.totalorder %s8, 1
    %p47 = scmp.ne.s32.totalorder %s42, %s44
    %p48 = scmp.eq.s32.totalorder %s8, 0
    %p49 = por %p47, %p48
    %p50 = scmp.ne.s32.totalorder %s42, %s44
    %p51 = scmp.eq.s32.totalorder %s13, 1
    %p52 = por %p50, %p51
    %p53 = scmp.ne.s32.totalorder %s44, %s45
    %p54 = scmp.eq.s32.totalorder %s13, 0
    %p55 = por %p53, %p54
    %p56 = scmp.ne.s32.totalorder %s44, %s45
    %p57 = scmp.eq.s32.totalorder %s14, 1
    %p58 = por %p56, %p57
    %p60 = scmp.ne.s32.totalorder %s45, %s59
    %p61 = scmp.eq.s32.totalorder %s14, 0
    %p62 = por %p60, %p61
    %s63 = ssub.s32 %s8, %s15
    %p64 = scmp.eq.s32.totalorder %s63, 0
    %s66 = sadd.s32 %s65, 1
    %s67 = scalar_select %p64, %s65, %s66
    %p70 = pneg %p64
    %p71 = scmp.eq.s32.totalorder %s8, 1
    %p72 = por %p70, %p71
    %p73 = scmp.ne.s32.totalorder %s65, %s68
    %p74 = scmp.eq.s32.totalorder %s8, 0
    %p75 = por %p73, %p74
    %p76 = scmp.ne.s32.totalorder %s65, %s68
    %p77 = scmp.eq.s32.totalorder %s13, 1
    %p78 = por %p76, %p77
    %p79 = scmp.ne.s32.totalorder %s68, %s69
    %p80 = scmp.eq.s32.totalorder %s13, 0
    %p81 = por %p79, %p80
    %p82 = scmp.ne.s32.totalorder %s68, %s69
    %p83 = scmp.eq.s32.totalorder %s14, 1
    %p84 = por %p82, %p83
    %p86 = scmp.ne.s32.totalorder %s69, %s85
    %p87 = scmp.eq.s32.totalorder %s14, 0
    %p88 = por %p86, %p87
    %p89 = scmp.le.s32.totalorder 1, %s8
    %p90 = scmp.lt.s32.totalorder %s8, 3
    %p91 = pnand %p89, %p90
    %p92 = pneg %p91
    // Predicated region
    $region9: #{gcn_forward.3} parent=5 // pred_check
      _
    $region10: #{gcn_forward.3} parent=5 // pred_check_branch
      %94 = sbr.rel (%p91) target = $region12
    $region11: #{gcn_forward.3} parent=5 // pred_region
      %s95 = ssub.s32 %s8, 1
      // Predicated region
      $region13: #{gcn_forward.3} parent=11 // pred_check
        %p96 = pneg %p55
      $region14: #{gcn_forward.3} parent=11 // pred_check_branch
        %98 = sbr.rel (%p96) target = $region16
      $region15: #{gcn_forward.3} parent=11 // pred_region
        _
      $region16: #{gcn_forward.3} parent=11 // pred_fallthru
        _
    $region12: #{gcn_forward.3} parent=5 // pred_fallthru
      _
    %p99 = scmp.lt.s32.totalorder %s8, 2
    // Predicated region
    $region17: #{gcn_forward.3} parent=5 // pred_check
      %p100 = pneg %p99
    $region18: #{gcn_forward.3} parent=5 // pred_check_branch
      %102 = sbr.rel (%p100) target = $region20
    $region19: #{gcn_forward.3} parent=5 // pred_region
      // Predicated region
      $region21: #{gcn_forward.3} parent=19 // pred_check
        %p103 = pneg %p28
      $region22: #{gcn_forward.3} parent=19 // pred_check_branch
        %105 = sbr.rel (%p103) target = $region24
      $region23: #{gcn_forward.3} parent=19 // pred_region
        %s106 = smul.u32 32, %s8
        %p107 = scmp.lt.s32.totalorder %s106, 63
        %s108 = scalar_select %p107, %s106, 63
        %s109 = smul.addr %s108, 4
        %s110 = smul.addr %s109, 4
        %s111 = scalar_lea.vmem %s0, %s110
        %s112 = smul.u32 32, %s8
      $region24: #{gcn_forward.3} parent=19 // pred_fallthru
        _
    $region20: #{gcn_forward.3} parent=5 // pred_fallthru
      _
    %p113 = scmp.le.s32.totalorder 1, %s8
    %p114 = scmp.lt.s32.totalorder %s8, 3
    %p115 = pnand %p113, %p114
    %p116 = pneg %p115
    // Predicated region
    $region25: #{gcn_forward.3} parent=5 // pred_check
      _
    $region26: #{gcn_forward.3} parent=5 // pred_check_branch
      %118 = sbr.rel (%p115) target = $region28
    $region27: #{gcn_forward.3} parent=5 // pred_region
      %s119 = ssub.s32 %s8, 1
      %s120 = smul.u32 32, %s13
      %p121 = scmp.lt.s32.totalorder %s120, 63
      %s122 = scalar_select %p121, %s120, 63
      %s123 = smul.addr %s122, 4
      %s124 = smul.addr %s123, 4
      %s125 = scalar_lea.vmem %s0, %s124
      %p126 = pneg %p34
      %p127 = pneg %p31
      %p128 = pneg %p55
      %p129 = pneg %p52
      %p130 = pneg %p81
      %p131 = pneg %p78
      %s132 = smul.u32 32, %s13
      %p133 = scmp.lt.s32.totalorder %s132, 63
      %s134 = scalar_select %p133, %s132, 63
      %s135 = smul.addr %s134, 8
      %s136 = scalar_lea.vmem %s2, %s135
      %s137 = smul.u32 32, %s13
      %p138 = scmp.lt.s32.totalorder %s137, 63
      %s139 = scalar_select %p138, %s137, 63
      %s140 = smul.addr %s139, 4
      %s141 = smul.addr %s140, 4
      %s142 = scalar_lea.vmem %s0, %s141
      %s143 = smul.u32 32, %s13
      %s144 = smul.u32 32, %s13
      %p145 = scmp.lt.s32.totalorder %s144, 63
      %s146 = scalar_select %p145, %s144, 63
      %s147 = smul.addr %s146, 8
      %s148 = scalar_lea.vmem %s2, %s147
      %s149 = smul.u32 32, %s13
      %v150 = vld [vmem:[%s142] sm:$0xff]
      %v151 = vld [vmem:[%s142 + $0x8] sm:$0xff]
      %v152 = vld [vmem:[%s142 + $0x10] sm:$0xff]
      %v153 = vld [vmem:[%s142 + $0x18] sm:$0xff]
      %v154 = vld [vmem:[%s142 + $0x20] sm:$0xff]
      %v155 = vld [vmem:[%s142 + $0x28] sm:$0xff]
      %v156 = vld [vmem:[%s142 + $0x30] sm:$0xff]
      %v157 = vld [vmem:[%s142 + $0x38] sm:$0xff]
      %v158 = vld [vmem:[%s142 + $0x40] sm:$0xff]
      %v159 = vld [vmem:[%s142 + $0x48] sm:$0xff]
      %v160 = vld [vmem:[%s142 + $0x50] sm:$0xff]
      %v161 = vld [vmem:[%s142 + $0x58] sm:$0xff]
      %v162 = vld [vmem:[%s142 + $0x60] sm:$0xff]
      %v163 = vld [vmem:[%s142 + $0x68] sm:$0xff]
      %v164 = vld [vmem:[%s142 + $0x70] sm:$0xff]
      %v165 = vld [vmem:[%s142 + $0x78] sm:$0xff]
      %v166 = vld [vmem:[%s142 + $0x80] sm:$0xff]
      %v167 = vld [vmem:[%s142 + $0x88] sm:$0xff]
      %v168 = vld [vmem:[%s142 + $0x90] sm:$0xff]
      %v169 = vld [vmem:[%s142 + $0x98] sm:$0xff]
      %v170 = vld [vmem:[%s142 + $0xa0] sm:$0xff]
      %v171 = vld [vmem:[%s142 + $0xa8] sm:$0xff]
      %v172 = vld [vmem:[%s142 + $0xb0] sm:$0xff]
      %v173 = vld [vmem:[%s142 + $0xb8] sm:$0xff]
      %v174 = vld [vmem:[%s142 + $0xc0] sm:$0xff]
      %v175 = vld [vmem:[%s142 + $0xc8] sm:$0xff]
      %v176 = vld [vmem:[%s142 + $0xd0] sm:$0xff]
      %v177 = vld [vmem:[%s142 + $0xd8] sm:$0xff]
      %v178 = vld [vmem:[%s142 + $0xe0] sm:$0xff]
      %v179 = vld [vmem:[%s142 + $0xe8] sm:$0xff]
      %v180 = vld [vmem:[%s142 + $0xf0] sm:$0xff]
      %v181 = vld [vmem:[%s142 + $0xf8] sm:$0xff]
      %v182 = vld [vmem:[%s142 + $0x100] sm:$0xff]
      %v183 = vld [vmem:[%s142 + $0x108] sm:$0xff]
      %v184 = vld [vmem:[%s142 + $0x110] sm:$0xff]
      %v185 = vld [vmem:[%s142 + $0x118] sm:$0xff]
      %v186 = vld [vmem:[%s142 + $0x120] sm:$0xff]
      %v187 = vld [vmem:[%s142 + $0x128] sm:$0xff]
      %v188 = vld [vmem:[%s142 + $0x130] sm:$0xff]
      %v189 = vld [vmem:[%s142 + $0x138] sm:$0xff]
      %v190 = vld [vmem:[%s142 + $0x140] sm:$0xff]
      %v191 = vld [vmem:[%s142 + $0x148] sm:$0xff]
      %v192 = vld [vmem:[%s142 + $0x150] sm:$0xff]
      %v193 = vld [vmem:[%s142 + $0x158] sm:$0xff]
      %v194 = vld [vmem:[%s142 + $0x160] sm:$0xff]
      %v195 = vld [vmem:[%s142 + $0x168] sm:$0xff]
      %v196 = vld [vmem:[%s142 + $0x170] sm:$0xff]
      %v197 = vld [vmem:[%s142 + $0x178] sm:$0xff]
      %v198 = vld [vmem:[%s142 + $0x180] sm:$0xff]
      %v199 = vld [vmem:[%s142 + $0x188] sm:$0xff]
      %v200 = vld [vmem:[%s142 + $0x190] sm:$0xff]
      %v201 = vld [vmem:[%s142 + $0x198] sm:$0xff]
      %v202 = vld [vmem:[%s142 + $0x1a0] sm:$0xff]
      %v203 = vld [vmem:[%s142 + $0x1a8] sm:$0xff]
      %v204 = vld [vmem:[%s142 + $0x1b0] sm:$0xff]
      %v205 = vld [vmem:[%s142 + $0x1b8] sm:$0xff]
      %v206 = vld [vmem:[%s142 + $0x1c0] sm:$0xff]
      %v207 = vld [vmem:[%s142 + $0x1c8] sm:$0xff]
      %v208 = vld [vmem:[%s142 + $0x1d0] sm:$0xff]
      %v209 = vld [vmem:[%s142 + $0x1d8] sm:$0xff]
      %v210 = vld [vmem:[%s142 + $0x1e0] sm:$0xff]
      %v211 = vld [vmem:[%s142 + $0x1e8] sm:$0xff]
      %v212 = vld [vmem:[%s142 + $0x1f0] sm:$0xff]
      %v213 = vld [vmem:[%s142 + $0x1f8] sm:$0xff]
      %v214 = vld [vmem:[%s1] sm:$0xf]
      %v215 = vld [vmem:[%s1 + $0x4] sm:$0xf]
      %v216 = vld [vmem:[%s1 + $0x8] sm:$0xf]
      %v217 = vld [vmem:[%s1 + $0xc] sm:$0xf]
      %v218 = vld [vmem:[%s1 + $0x10] sm:$0xf]
      %v219 = vld [vmem:[%s1 + $0x14] sm:$0xf]
      %v220 = vld [vmem:[%s1 + $0x18] sm:$0xf]
      %v221 = vld [vmem:[%s1 + $0x1c] sm:$0xf]
      %v222 = vld [vmem:[%s1 + $0x20] sm:$0xf]
      %v223 = vld [vmem:[%s1 + $0x24] sm:$0xf]
      %v224 = vld [vmem:[%s1 + $0x28] sm:$0xf]
      %v225 = vld [vmem:[%s1 + $0x2c] sm:$0xf]
      %v226 = vld [vmem:[%s1 + $0x30] sm:$0xf]
      %v227 = vld [vmem:[%s1 + $0x34] sm:$0xf]
      %v228 = vld [vmem:[%s1 + $0x38] sm:$0xf]
      %v229 = vld [vmem:[%s1 + $0x3c] sm:$0xf]
      %v230 = vld [vmem:[%s1 + $0x40] sm:$0xf]
      %v231 = vld [vmem:[%s1 + $0x44] sm:$0xf]
      %v232 = vld [vmem:[%s1 + $0x48] sm:$0xf]
      %v233 = vld [vmem:[%s1 + $0x4c] sm:$0xf]
      %v234 = vld [vmem:[%s1 + $0x50] sm:$0xf]
      %v235 = vld [vmem:[%s1 + $0x54] sm:$0xf]
      %v236 = vld [vmem:[%s1 + $0x58] sm:$0xf]
      %v237 = vld [vmem:[%s1 + $0x5c] sm:$0xf]
      %v238 = vld [vmem:[%s1 + $0x60] sm:$0xf]
      %v239 = vld [vmem:[%s1 + $0x64] sm:$0xf]
      %v240 = vld [vmem:[%s1 + $0x68] sm:$0xf]
      %v241 = vld [vmem:[%s1 + $0x6c] sm:$0xf]
      %v242 = vld [vmem:[%s1 + $0x70] sm:$0xf]
      %v243 = vld [vmem:[%s1 + $0x74] sm:$0xf]
      %v244 = vld [vmem:[%s1 + $0x78] sm:$0xf]
      %v245 = vld [vmem:[%s1 + $0x7c] sm:$0xf]
      %v246 = vld [vmem:[%s1 + $0x80] sm:$0xf]
      %v247 = vld [vmem:[%s1 + $0x84] sm:$0xf]
      %v248 = vld [vmem:[%s1 + $0x88] sm:$0xf]
      %v249 = vld [vmem:[%s1 + $0x8c] sm:$0xf]
      %v250 = vld [vmem:[%s1 + $0x90] sm:$0xf]
      %v251 = vld [vmem:[%s1 + $0x94] sm:$0xf]
      %v252 = vld [vmem:[%s1 + $0x98] sm:$0xf]
      %v253 = vld [vmem:[%s1 + $0x9c] sm:$0xf]
      %v254 = vld [vmem:[%s1 + $0xa0] sm:$0xf]
      %v255 = vld [vmem:[%s1 + $0xa4] sm:$0xf]
      %v256 = vld [vmem:[%s1 + $0xa8] sm:$0xf]
      %v257 = vld [vmem:[%s1 + $0xac] sm:$0xf]
      %v258 = vld [vmem:[%s1 + $0xb0] sm:$0xf]
      %v259 = vld [vmem:[%s1 + $0xb4] sm:$0xf]
      %v260 = vld [vmem:[%s1 + $0xb8] sm:$0xf]
      %v261 = vld [vmem:[%s1 + $0xbc] sm:$0xf]
      %v262 = vld [vmem:[%s1 + $0xc0] sm:$0xf]
      %v263 = vld [vmem:[%s1 + $0xc4] sm:$0xf]
      %v264 = vld [vmem:[%s1 + $0xc8] sm:$0xf]
      %v265 = vld [vmem:[%s1 + $0xcc] sm:$0xf]
      %v266 = vld [vmem:[%s1 + $0xd0] sm:$0xf]
      %v267 = vld [vmem:[%s1 + $0xd4] sm:$0xf]
      %v268 = vld [vmem:[%s1 + $0xd8] sm:$0xf]
      %v269 = vld [vmem:[%s1 + $0xdc] sm:$0xf]
      %v270 = vld [vmem:[%s1 + $0xe0] sm:$0xf]
      %v271 = vld [vmem:[%s1 + $0xe4] sm:$0xf]
      %v272 = vld [vmem:[%s1 + $0xe8] sm:$0xf]
      %v273 = vld [vmem:[%s1 + $0xec] sm:$0xf]
      %v274 = vld [vmem:[%s1 + $0xf0] sm:$0xf]
      %v275 = vld [vmem:[%s1 + $0xf4] sm:$0xf]
      %v276 = vld [vmem:[%s1 + $0xf8] sm:$0xf]
      %v277 = vld [vmem:[%s1 + $0xfc] sm:$0xf]
      %v342 = vunpack.c.l.b16 %v150
      %v343 = vunpack.c.h.b16 %v150
      %v344 = vunpack.c.l.b16 %v151
      %v345 = vunpack.c.h.b16 %v151
      %v346 = vunpack.c.l.b16 %v152
      %v347 = vunpack.c.h.b16 %v152
      %v348 = vunpack.c.l.b16 %v153
      %v349 = vunpack.c.h.b16 %v153
      %v350 = vunpack.c.l.b16 %v154
      %v351 = vunpack.c.h.b16 %v154
      %v352 = vunpack.c.l.b16 %v155
      %v353 = vunpack.c.h.b16 %v155
      %v354 = vunpack.c.l.b16 %v156
      %v355 = vunpack.c.h.b16 %v156
      %v356 = vunpack.c.l.b16 %v157
      %v357 = vunpack.c.h.b16 %v157
      %v358 = vunpack.c.l.b16 %v158
      %v359 = vunpack.c.h.b16 %v158
      %v360 = vunpack.c.l.b16 %v159
      %v361 = vunpack.c.h.b16 %v159
      %v362 = vunpack.c.l.b16 %v160
      %v363 = vunpack.c.h.b16 %v160
      %v364 = vunpack.c.l.b16 %v161
      %v365 = vunpack.c.h.b16 %v161
      %v366 = vunpack.c.l.b16 %v162
      %v367 = vunpack.c.h.b16 %v162
      %v368 = vunpack.c.l.b16 %v163
      %v369 = vunpack.c.h.b16 %v163
      %v370 = vunpack.c.l.b16 %v164
      %v371 = vunpack.c.h.b16 %v164
      %v372 = vunpack.c.l.b16 %v165
      %v373 = vunpack.c.h.b16 %v165
      %v374 = vunpack.c.l.b16 %v166
      %v375 = vunpack.c.h.b16 %v166
      %v376 = vunpack.c.l.b16 %v167
      %v377 = vunpack.c.h.b16 %v167
      %v378 = vunpack.c.l.b16 %v168
      %v379 = vunpack.c.h.b16 %v168
      %v380 = vunpack.c.l.b16 %v169
      %v381 = vunpack.c.h.b16 %v169
      %v382 = vunpack.c.l.b16 %v170
      %v383 = vunpack.c.h.b16 %v170
      %v384 = vunpack.c.l.b16 %v171
      %v385 = vunpack.c.h.b16 %v171
      %v386 = vunpack.c.l.b16 %v172
      %v387 = vunpack.c.h.b16 %v172
      %v388 = vunpack.c.l.b16 %v173
      %v389 = vunpack.c.h.b16 %v173
      %v390 = vunpack.c.l.b16 %v174
      %v391 = vunpack.c.h.b16 %v174
      %v392 = vunpack.c.l.b16 %v175
      %v393 = vunpack.c.h.b16 %v175
      %v394 = vunpack.c.l.b16 %v176
      %v395 = vunpack.c.h.b16 %v176
      %v396 = vunpack.c.l.b16 %v177
      %v397 = vunpack.c.h.b16 %v177
      %v398 = vunpack.c.l.b16 %v178
      %v399 = vunpack.c.h.b16 %v178
      %v400 = vunpack.c.l.b16 %v179
      %v401 = vunpack.c.h.b16 %v179
      %v402 = vunpack.c.l.b16 %v180
      %v403 = vunpack.c.h.b16 %v180
      %v404 = vunpack.c.l.b16 %v181
      %v405 = vunpack.c.h.b16 %v181
      %v406 = vunpack.c.l.b16 %v182
      %v407 = vunpack.c.h.b16 %v182
      %v408 = vunpack.c.l.b16 %v183
      %v409 = vunpack.c.h.b16 %v183
      %v410 = vunpack.c.l.b16 %v184
      %v411 = vunpack.c.h.b16 %v184
      %v412 = vunpack.c.l.b16 %v185
      %v413 = vunpack.c.h.b16 %v185
      %v414 = vunpack.c.l.b16 %v186
      %v415 = vunpack.c.h.b16 %v186
      %v416 = vunpack.c.l.b16 %v187
      %v417 = vunpack.c.h.b16 %v187
      %v418 = vunpack.c.l.b16 %v188
      %v419 = vunpack.c.h.b16 %v188
      %v420 = vunpack.c.l.b16 %v189
      %v421 = vunpack.c.h.b16 %v189
      %v422 = vunpack.c.l.b16 %v190
      %v423 = vunpack.c.h.b16 %v190
      %v424 = vunpack.c.l.b16 %v191
      %v425 = vunpack.c.h.b16 %v191
      %v426 = vunpack.c.l.b16 %v192
      %v427 = vunpack.c.h.b16 %v192
      %v428 = vunpack.c.l.b16 %v193
      %v429 = vunpack.c.h.b16 %v193
      %v430 = vunpack.c.l.b16 %v194
      %v431 = vunpack.c.h.b16 %v194
      %v432 = vunpack.c.l.b16 %v195
      %v433 = vunpack.c.h.b16 %v195
      %v434 = vunpack.c.l.b16 %v196
      %v435 = vunpack.c.h.b16 %v196
      %v436 = vunpack.c.l.b16 %v197
      %v437 = vunpack.c.h.b16 %v197
      %v438 = vunpack.c.l.b16 %v198
      %v439 = vunpack.c.h.b16 %v198
      %v440 = vunpack.c.l.b16 %v199
      %v441 = vunpack.c.h.b16 %v199
      %v442 = vunpack.c.l.b16 %v200
      %v443 = vunpack.c.h.b16 %v200
      %v444 = vunpack.c.l.b16 %v201
      %v445 = vunpack.c.h.b16 %v201
      %v446 = vunpack.c.l.b16 %v202
      %v447 = vunpack.c.h.b16 %v202
      %v448 = vunpack.c.l.b16 %v203
      %v449 = vunpack.c.h.b16 %v203
      %v450 = vunpack.c.l.b16 %v204
      %v451 = vunpack.c.h.b16 %v204
      %v452 = vunpack.c.l.b16 %v205
      %v453 = vunpack.c.h.b16 %v205
      %v454 = vunpack.c.l.b16 %v206
      %v455 = vunpack.c.h.b16 %v206
      %v456 = vunpack.c.l.b16 %v207
      %v457 = vunpack.c.h.b16 %v207
      %v458 = vunpack.c.l.b16 %v208
      %v459 = vunpack.c.h.b16 %v208
      %v460 = vunpack.c.l.b16 %v209
      %v461 = vunpack.c.h.b16 %v209
      %v462 = vunpack.c.l.b16 %v210
      %v463 = vunpack.c.h.b16 %v210
      %v464 = vunpack.c.l.b16 %v211
      %v465 = vunpack.c.h.b16 %v211
      %v466 = vunpack.c.l.b16 %v212
      %v467 = vunpack.c.h.b16 %v212
      %v468 = vunpack.c.l.b16 %v213
      %v469 = vunpack.c.h.b16 %v213
      %v470 = vpack.c.b16 %v346, %v342
      %v471 = vpack.c.b16 %v347, %v343
      %v472 = vpack.c.b16 %v348, %v344
      %v473 = vpack.c.b16 %v349, %v345
      %v474 = vpack.c.b16 %v354, %v350
      %v475 = vpack.c.b16 %v355, %v351
      %v476 = vpack.c.b16 %v356, %v352
      %v477 = vpack.c.b16 %v357, %v353
      %v478 = vpack.c.b16 %v362, %v358
      %v479 = vpack.c.b16 %v363, %v359
      %v480 = vpack.c.b16 %v364, %v360
      %v481 = vpack.c.b16 %v365, %v361
      %v482 = vpack.c.b16 %v370, %v366
      %v483 = vpack.c.b16 %v371, %v367
      %v484 = vpack.c.b16 %v372, %v368
      %v485 = vpack.c.b16 %v373, %v369
      %v486 = vpack.c.b16 %v378, %v374
      %v487 = vpack.c.b16 %v379, %v375
      %v488 = vpack.c.b16 %v380, %v376
      %v489 = vpack.c.b16 %v381, %v377
      %v490 = vpack.c.b16 %v386, %v382
      %v491 = vpack.c.b16 %v387, %v383
      %v492 = vpack.c.b16 %v388, %v384
      %v493 = vpack.c.b16 %v389, %v385
      %v494 = vpack.c.b16 %v394, %v390
      %v495 = vpack.c.b16 %v395, %v391
      %v496 = vpack.c.b16 %v396, %v392
      %v497 = vpack.c.b16 %v397, %v393
      %v498 = vpack.c.b16 %v402, %v398
      %v499 = vpack.c.b16 %v403, %v399
      %v500 = vpack.c.b16 %v404, %v400
      %v501 = vpack.c.b16 %v405, %v401
      %v502 = vpack.c.b16 %v410, %v406
      %v503 = vpack.c.b16 %v411, %v407
      %v504 = vpack.c.b16 %v412, %v408
      %v505 = vpack.c.b16 %v413, %v409
      %v506 = vpack.c.b16 %v418, %v414
      %v507 = vpack.c.b16 %v419, %v415
      %v508 = vpack.c.b16 %v420, %v416
      %v509 = vpack.c.b16 %v421, %v417
      %v510 = vpack.c.b16 %v426, %v422
      %v511 = vpack.c.b16 %v427, %v423
      %v512 = vpack.c.b16 %v428, %v424
      %v513 = vpack.c.b16 %v429, %v425
      %v514 = vpack.c.b16 %v434, %v430
      %v515 = vpack.c.b16 %v435, %v431
      %v516 = vpack.c.b16 %v436, %v432
      %v517 = vpack.c.b16 %v437, %v433
      %v518 = vpack.c.b16 %v442, %v438
      %v519 = vpack.c.b16 %v443, %v439
      %v520 = vpack.c.b16 %v444, %v440
      %v521 = vpack.c.b16 %v445, %v441
      %v522 = vpack.c.b16 %v450, %v446
      %v523 = vpack.c.b16 %v451, %v447
      %v524 = vpack.c.b16 %v452, %v448
      %v525 = vpack.c.b16 %v453, %v449
      %v526 = vpack.c.b16 %v458, %v454
      %v527 = vpack.c.b16 %v459, %v455
      %v528 = vpack.c.b16 %v460, %v456
      %v529 = vpack.c.b16 %v461, %v457
      %v530 = vpack.c.b16 %v466, %v462
      %v531 = vpack.c.b16 %v467, %v463
      %v532 = vpack.c.b16 %v468, %v464
      %v533 = vpack.c.b16 %v469, %v465
      %v662 = vunpack.c.l.b16 %v214
      %v663 = vunpack.c.l.b16 %v215
      %v664 = vunpack.c.l.b16 %v216
      %v665 = vunpack.c.l.b16 %v217
      %v666 = vunpack.c.l.b16 %v218
      %v667 = vunpack.c.l.b16 %v219
      %v668 = vunpack.c.l.b16 %v220
      %v669 = vunpack.c.l.b16 %v221
      %v670 = vunpack.c.l.b16 %v222
      %v671 = vunpack.c.l.b16 %v223
      %v672 = vunpack.c.l.b16 %v224
      %v673 = vunpack.c.l.b16 %v225
      %v674 = vunpack.c.l.b16 %v226
      %v675 = vunpack.c.l.b16 %v227
      %v676 = vunpack.c.l.b16 %v228
      %v677 = vunpack.c.l.b16 %v229
      %v678 = vunpack.c.l.b16 %v230
      %v679 = vunpack.c.l.b16 %v231
      %v680 = vunpack.c.l.b16 %v232
      %v681 = vunpack.c.l.b16 %v233
      %v682 = vunpack.c.l.b16 %v234
      %v683 = vunpack.c.l.b16 %v235
      %v684 = vunpack.c.l.b16 %v236
      %v685 = vunpack.c.l.b16 %v237
      %v686 = vunpack.c.l.b16 %v238
      %v687 = vunpack.c.l.b16 %v239
      %v688 = vunpack.c.l.b16 %v240
      %v689 = vunpack.c.l.b16 %v241
      %v690 = vunpack.c.l.b16 %v242
      %v691 = vunpack.c.l.b16 %v243
      %v692 = vunpack.c.l.b16 %v244
      %v693 = vunpack.c.l.b16 %v245
      %v694 = vunpack.c.l.b16 %v246
      %v695 = vunpack.c.l.b16 %v247
      %v696 = vunpack.c.l.b16 %v248
      %v697 = vunpack.c.l.b16 %v249
      %v698 = vunpack.c.l.b16 %v250
      %v699 = vunpack.c.l.b16 %v251
      %v700 = vunpack.c.l.b16 %v252
      %v701 = vunpack.c.l.b16 %v253
      %v702 = vunpack.c.l.b16 %v254
      %v703 = vunpack.c.l.b16 %v255
      %v704 = vunpack.c.l.b16 %v256
      %v705 = vunpack.c.l.b16 %v257
      %v706 = vunpack.c.l.b16 %v258
      %v707 = vunpack.c.l.b16 %v259
      %v708 = vunpack.c.l.b16 %v260
      %v709 = vunpack.c.l.b16 %v261
      %v710 = vunpack.c.l.b16 %v262
      %v711 = vunpack.c.l.b16 %v263
      %v712 = vunpack.c.l.b16 %v264
      %v713 = vunpack.c.l.b16 %v265
      %v714 = vunpack.c.l.b16 %v266
      %v715 = vunpack.c.l.b16 %v267
      %v716 = vunpack.c.l.b16 %v268
      %v717 = vunpack.c.l.b16 %v269
      %v718 = vunpack.c.l.b16 %v270
      %v719 = vunpack.c.l.b16 %v271
      %v720 = vunpack.c.l.b16 %v272
      %v721 = vunpack.c.l.b16 %v273
      %v722 = vunpack.c.l.b16 %v274
      %v723 = vunpack.c.l.b16 %v275
      %v724 = vunpack.c.l.b16 %v276
      %v725 = vunpack.c.l.b16 %v277
      %v726 = vpack.c.b16 %v663, %v662
      %v727 = vpack.c.b16 %v665, %v664
      %v728 = vpack.c.b16 %v667, %v666
      %v729 = vpack.c.b16 %v669, %v668
      %v730 = vpack.c.b16 %v671, %v670
      %v731 = vpack.c.b16 %v673, %v672
      %v732 = vpack.c.b16 %v675, %v674
      %v733 = vpack.c.b16 %v677, %v676
      %v734 = vpack.c.b16 %v679, %v678
      %v735 = vpack.c.b16 %v681, %v680
      %v736 = vpack.c.b16 %v683, %v682
      %v737 = vpack.c.b16 %v685, %v684
      %v738 = vpack.c.b16 %v687, %v686
      %v739 = vpack.c.b16 %v689, %v688
      %v740 = vpack.c.b16 %v691, %v690
      %v741 = vpack.c.b16 %v693, %v692
      %v742 = vpack.c.b16 %v695, %v694
      %v743 = vpack.c.b16 %v697, %v696
      %v744 = vpack.c.b16 %v699, %v698
      %v745 = vpack.c.b16 %v701, %v700
      %v746 = vpack.c.b16 %v703, %v702
      %v747 = vpack.c.b16 %v705, %v704
      %v748 = vpack.c.b16 %v707, %v706
      %v749 = vpack.c.b16 %v709, %v708
      %v750 = vpack.c.b16 %v711, %v710
      %v751 = vpack.c.b16 %v713, %v712
      %v752 = vpack.c.b16 %v715, %v714
      %v753 = vpack.c.b16 %v717, %v716
      %v754 = vpack.c.b16 %v719, %v718
      %v755 = vpack.c.b16 %v721, %v720
      %v756 = vpack.c.b16 %v723, %v722
      %v757 = vpack.c.b16 %v725, %v724
      %790 = vmatpush.bf16.msra.mxu0 %v733
      %791 = vmatpush.bf16.msra.mxu0 %v732
      %792 = vmatpush.bf16.msra.mxu0 %v731
      %793 = vmatpush.bf16.msra.mxu0 %v730
      %794 = vmatpush.bf16.msra.mxu0 %v729
      %795 = vmatpush.bf16.msra.mxu0 %v728
      %796 = vmatpush.bf16.msra.mxu0 %v727
      %797 = vmatpush.bf16.msra.mxu0 %v726
      %798 = vmatmul.bf16.gmra.mxu0 %v470
      %v799 = vpop.f32.mrf.mxu0
      %v800 = vadd.f32 0.0, %v799
      %v801 = vpop.f32.mrf.mxu0
      %v802 = vadd.f32 0.0, %v801
      %803 = vmatmul.bf16.gmra.mxu0 %v474
      %v804 = vpop.f32.mrf.mxu0
      %v805 = vadd.f32 0.0, %v804
      %v806 = vpop.f32.mrf.mxu0
      %v807 = vadd.f32 0.0, %v806
      %808 = vmatmul.bf16.gmra.mxu0 %v478
      %v809 = vpop.f32.mrf.mxu0
      %v810 = vadd.f32 0.0, %v809
      %v811 = vpop.f32.mrf.mxu0
      %v812 = vadd.f32 0.0, %v811
      %813 = vmatmul.bf16.gmra.mxu0 %v482
      %v814 = vpop.f32.mrf.mxu0
      %v815 = vadd.f32 0.0, %v814
      %v816 = vpop.f32.mrf.mxu0
      %v817 = vadd.f32 0.0, %v816
      %818 = vmatmul.bf16.gmra.mxu0 %v486
      %v819 = vpop.f32.mrf.mxu0
      %v820 = vadd.f32 0.0, %v819
      %v821 = vpop.f32.mrf.mxu0
      %v822 = vadd.f32 0.0, %v821
      %823 = vmatmul.bf16.gmra.mxu0 %v490
      %v824 = vpop.f32.mrf.mxu0
      %v825 = vadd.f32 0.0, %v824
      %v826 = vpop.f32.mrf.mxu0
      %v827 = vadd.f32 0.0, %v826
      %828 = vmatmul.bf16.gmra.mxu0 %v494
      %v829 = vpop.f32.mrf.mxu0
      %v830 = vadd.f32 0.0, %v829
      %v831 = vpop.f32.mrf.mxu0
      %v832 = vadd.f32 0.0, %v831
      %833 = vmatmul.bf16.gmra.mxu0 %v498
      %v834 = vpop.f32.mrf.mxu0
      %v835 = vadd.f32 0.0, %v834
      %v836 = vpop.f32.mrf.mxu0
      %v837 = vadd.f32 0.0, %v836
      %838 = vmatmul.bf16.gmra.mxu0 %v502
      %v839 = vpop.f32.mrf.mxu0
      %v840 = vadd.f32 0.0, %v839
      %v841 = vpop.f32.mrf.mxu0
      %v842 = vadd.f32 0.0, %v841
      %843 = vmatmul.bf16.gmra.mxu0 %v506
      %v844 = vpop.f32.mrf.mxu0
      %v845 = vadd.f32 0.0, %v844
      %v846 = vpop.f32.mrf.mxu0
      %v847 = vadd.f32 0.0, %v846
      %848 = vmatmul.bf16.gmra.mxu0 %v510
      %v849 = vpop.f32.mrf.mxu0
      %v850 = vadd.f32 0.0, %v849
      %v851 = vpop.f32.mrf.mxu0
      %v852 = vadd.f32 0.0, %v851
      %853 = vmatmul.bf16.gmra.mxu0 %v514
      %v854 = vpop.f32.mrf.mxu0
      %v855 = vadd.f32 0.0, %v854
      %v856 = vpop.f32.mrf.mxu0
      %v857 = vadd.f32 0.0, %v856
      %858 = vmatmul.bf16.gmra.mxu0 %v518
      %v859 = vpop.f32.mrf.mxu0
      %v860 = vadd.f32 0.0, %v859
      %v861 = vpop.f32.mrf.mxu0
      %v862 = vadd.f32 0.0, %v861
      %863 = vmatmul.bf16.gmra.mxu0 %v522
      %v864 = vpop.f32.mrf.mxu0
      %v865 = vadd.f32 0.0, %v864
      %v866 = vpop.f32.mrf.mxu0
      %v867 = vadd.f32 0.0, %v866
      %868 = vmatmul.bf16.gmra.mxu0 %v526
      %v869 = vpop.f32.mrf.mxu0
      %v870 = vadd.f32 0.0, %v869
      %v871 = vpop.f32.mrf.mxu0
      %v872 = vadd.f32 0.0, %v871
      %873 = vmatmul.bf16.gmra.mxu0 %v530
      %v874 = vpop.f32.mrf.mxu0
      %v875 = vadd.f32 0.0, %v874
      %v876 = vpop.f32.mrf.mxu0
      %v877 = vadd.f32 0.0, %v876
      %878 = vdwg.mxu0
      %879 = vmatpush.bf16.msra.mxu0 %v741
      %880 = vmatpush.bf16.msra.mxu0 %v740
      %881 = vmatpush.bf16.msra.mxu0 %v739
      %882 = vmatpush.bf16.msra.mxu0 %v738
      %883 = vmatpush.bf16.msra.mxu0 %v737
      %884 = vmatpush.bf16.msra.mxu0 %v736
      %885 = vmatpush.bf16.msra.mxu0 %v735
      %886 = vmatpush.bf16.msra.mxu0 %v734
      %887 = vmatmul.bf16.gmra.mxu0 %v471
      %v888 = vpop.f32.mrf.mxu0
      %v889 = vadd.f32 %v800, %v888
      %v890 = vpop.f32.mrf.mxu0
      %v891 = vadd.f32 %v802, %v890
      %892 = vmatmul.bf16.gmra.mxu0 %v475
      %v893 = vpop.f32.mrf.mxu0
      %v894 = vadd.f32 %v805, %v893
      %v895 = vpop.f32.mrf.mxu0
      %v896 = vadd.f32 %v807, %v895
      %897 = vmatmul.bf16.gmra.mxu0 %v479
      %v898 = vpop.f32.mrf.mxu0
      %v899 = vadd.f32 %v810, %v898
      %v900 = vpop.f32.mrf.mxu0
      %v901 = vadd.f32 %v812, %v900
      %902 = vmatmul.bf16.gmra.mxu0 %v483
      %v903 = vpop.f32.mrf.mxu0
      %v904 = vadd.f32 %v815, %v903
      %v905 = vpop.f32.mrf.mxu0
      %v906 = vadd.f32 %v817, %v905
      %907 = vmatmul.bf16.gmra.mxu0 %v487
      %v908 = vpop.f32.mrf.mxu0
      %v909 = vadd.f32 %v820, %v908
      %v910 = vpop.f32.mrf.mxu0
      %v911 = vadd.f32 %v822, %v910
      %912 = vmatmul.bf16.gmra.mxu0 %v491
      %v913 = vpop.f32.mrf.mxu0
      %v914 = vadd.f32 %v825, %v913
      %v915 = vpop.f32.mrf.mxu0
      %v916 = vadd.f32 %v827, %v915
      %917 = vmatmul.bf16.gmra.mxu0 %v495
      %v918 = vpop.f32.mrf.mxu0
      %v919 = vadd.f32 %v830, %v918
      %v920 = vpop.f32.mrf.mxu0
      %v921 = vadd.f32 %v832, %v920
      %922 = vmatmul.bf16.gmra.mxu0 %v499
      %v923 = vpop.f32.mrf.mxu0
      %v924 = vadd.f32 %v835, %v923
      %v925 = vpop.f32.mrf.mxu0
      %v926 = vadd.f32 %v837, %v925
      %927 = vmatmul.bf16.gmra.mxu0 %v503
      %v928 = vpop.f32.mrf.mxu0
      %v929 = vadd.f32 %v840, %v928
      %v930 = vpop.f32.mrf.mxu0
      %v931 = vadd.f32 %v842, %v930
      %932 = vmatmul.bf16.gmra.mxu0 %v507
      %v933 = vpop.f32.mrf.mxu0
      %v934 = vadd.f32 %v845, %v933
      %v935 = vpop.f32.mrf.mxu0
      %v936 = vadd.f32 %v847, %v935
      %937 = vmatmul.bf16.gmra.mxu0 %v511
      %v938 = vpop.f32.mrf.mxu0
      %v939 = vadd.f32 %v850, %v938
      %v940 = vpop.f32.mrf.mxu0
      %v941 = vadd.f32 %v852, %v940
      %942 = vmatmul.bf16.gmra.mxu0 %v515
      %v943 = vpop.f32.mrf.mxu0
      %v944 = vadd.f32 %v855, %v943
      %v945 = vpop.f32.mrf.mxu0
      %v946 = vadd.f32 %v857, %v945
      %947 = vmatmul.bf16.gmra.mxu0 %v519
      %v948 = vpop.f32.mrf.mxu0
      %v949 = vadd.f32 %v860, %v948
      %v950 = vpop.f32.mrf.mxu0
      %v951 = vadd.f32 %v862, %v950
      %952 = vmatmul.bf16.gmra.mxu0 %v523
      %v953 = vpop.f32.mrf.mxu0
      %v954 = vadd.f32 %v865, %v953
      %v955 = vpop.f32.mrf.mxu0
      %v956 = vadd.f32 %v867, %v955
      %957 = vmatmul.bf16.gmra.mxu0 %v527
      %v958 = vpop.f32.mrf.mxu0
      %v959 = vadd.f32 %v870, %v958
      %v960 = vpop.f32.mrf.mxu0
      %v961 = vadd.f32 %v872, %v960
      %962 = vmatmul.bf16.gmra.mxu0 %v531
      %v963 = vpop.f32.mrf.mxu0
      %v964 = vadd.f32 %v875, %v963
      %v965 = vpop.f32.mrf.mxu0
      %v966 = vadd.f32 %v877, %v965
      %967 = vdwg.mxu0
      %968 = vmatpush.bf16.msra.mxu0 %v749
      %969 = vmatpush.bf16.msra.mxu0 %v748
      %970 = vmatpush.bf16.msra.mxu0 %v747
      %971 = vmatpush.bf16.msra.mxu0 %v746
      %972 = vmatpush.bf16.msra.mxu0 %v745
      %973 = vmatpush.bf16.msra.mxu0 %v744
      %974 = vmatpush.bf16.msra.mxu0 %v743
      %975 = vmatpush.bf16.msra.mxu0 %v742
      %976 = vmatmul.bf16.gmra.mxu0 %v472
      %v977 = vpop.f32.mrf.mxu0
      %v978 = vadd.f32 %v889, %v977
      %v979 = vpop.f32.mrf.mxu0
      %v980 = vadd.f32 %v891, %v979
      %981 = vmatmul.bf16.gmra.mxu0 %v476
      %v982 = vpop.f32.mrf.mxu0
      %v983 = vadd.f32 %v894, %v982
      %v984 = vpop.f32.mrf.mxu0
      %v985 = vadd.f32 %v896, %v984
      %986 = vmatmul.bf16.gmra.mxu0 %v480
      %v987 = vpop.f32.mrf.mxu0
      %v988 = vadd.f32 %v899, %v987
      %v989 = vpop.f32.mrf.mxu0
      %v990 = vadd.f32 %v901, %v989
      %991 = vmatmul.bf16.gmra.mxu0 %v484
      %v992 = vpop.f32.mrf.mxu0
      %v993 = vadd.f32 %v904, %v992
      %v994 = vpop.f32.mrf.mxu0
      %v995 = vadd.f32 %v906, %v994
      %996 = vmatmul.bf16.gmra.mxu0 %v488
      %v997 = vpop.f32.mrf.mxu0
      %v998 = vadd.f32 %v909, %v997
      %v999 = vpop.f32.mrf.mxu0
      %v1000 = vadd.f32 %v911, %v999
      %1001 = vmatmul.bf16.gmra.mxu0 %v492
      %v1002 = vpop.f32.mrf.mxu0
      %v1003 = vadd.f32 %v914, %v1002
      %v1004 = vpop.f32.mrf.mxu0
      %v1005 = vadd.f32 %v916, %v1004
      %1006 = vmatmul.bf16.gmra.mxu0 %v496
      %v1007 = vpop.f32.mrf.mxu0
      %v1008 = vadd.f32 %v919, %v1007
      %v1009 = vpop.f32.mrf.mxu0
      %v1010 = vadd.f32 %v921, %v1009
      %1011 = vmatmul.bf16.gmra.mxu0 %v500
      %v1012 = vpop.f32.mrf.mxu0
      %v1013 = vadd.f32 %v924, %v1012
      %v1014 = vpop.f32.mrf.mxu0
      %v1015 = vadd.f32 %v926, %v1014
      %1016 = vmatmul.bf16.gmra.mxu0 %v504
      %v1017 = vpop.f32.mrf.mxu0
      %v1018 = vadd.f32 %v929, %v1017
      %v1019 = vpop.f32.mrf.mxu0
      %v1020 = vadd.f32 %v931, %v1019
      %1021 = vmatmul.bf16.gmra.mxu0 %v508
      %v1022 = vpop.f32.mrf.mxu0
      %v1023 = vadd.f32 %v934, %v1022
      %v1024 = vpop.f32.mrf.mxu0
      %v1025 = vadd.f32 %v936, %v1024
      %1026 = vmatmul.bf16.gmra.mxu0 %v512
      %v1027 = vpop.f32.mrf.mxu0
      %v1028 = vadd.f32 %v939, %v1027
      %v1029 = vpop.f32.mrf.mxu0
      %v1030 = vadd.f32 %v941, %v1029
      %1031 = vmatmul.bf16.gmra.mxu0 %v516
      %v1032 = vpop.f32.mrf.mxu0
      %v1033 = vadd.f32 %v944, %v1032
      %v1034 = vpop.f32.mrf.mxu0
      %v1035 = vadd.f32 %v946, %v1034
      %1036 = vmatmul.bf16.gmra.mxu0 %v520
      %v1037 = vpop.f32.mrf.mxu0
      %v1038 = vadd.f32 %v949, %v1037
      %v1039 = vpop.f32.mrf.mxu0
      %v1040 = vadd.f32 %v951, %v1039
      %1041 = vmatmul.bf16.gmra.mxu0 %v524
      %v1042 = vpop.f32.mrf.mxu0
      %v1043 = vadd.f32 %v954, %v1042
      %v1044 = vpop.f32.mrf.mxu0
      %v1045 = vadd.f32 %v956, %v1044
      %1046 = vmatmul.bf16.gmra.mxu0 %v528
      %v1047 = vpop.f32.mrf.mxu0
      %v1048 = vadd.f32 %v959, %v1047
      %v1049 = vpop.f32.mrf.mxu0
      %v1050 = vadd.f32 %v961, %v1049
      %1051 = vmatmul.bf16.gmra.mxu0 %v532
      %v1052 = vpop.f32.mrf.mxu0
      %v1053 = vadd.f32 %v964, %v1052
      %v1054 = vpop.f32.mrf.mxu0
      %v1055 = vadd.f32 %v966, %v1054
      %1056 = vdwg.mxu0
      %1057 = vmatpush.bf16.msra.mxu0 %v757
      %1058 = vmatpush.bf16.msra.mxu0 %v756
      %1059 = vmatpush.bf16.msra.mxu0 %v755
      %1060 = vmatpush.bf16.msra.mxu0 %v754
      %1061 = vmatpush.bf16.msra.mxu0 %v753
      %1062 = vmatpush.bf16.msra.mxu0 %v752
      %1063 = vmatpush.bf16.msra.mxu0 %v751
      %1064 = vmatpush.bf16.msra.mxu0 %v750
      %1065 = vmatmul.bf16.gmra.mxu0 %v473
      %v1066 = vpop.f32.mrf.mxu0
      %v1067 = vadd.f32 %v978, %v1066
      %v1068 = vpop.f32.mrf.mxu0
      %v1069 = vadd.f32 %v980, %v1068
      %1070 = vmatmul.bf16.gmra.mxu0 %v477
      %v1071 = vpop.f32.mrf.mxu0
      %v1072 = vadd.f32 %v983, %v1071
      %v1073 = vpop.f32.mrf.mxu0
      %v1074 = vadd.f32 %v985, %v1073
      %1075 = vmatmul.bf16.gmra.mxu0 %v481
      %v1076 = vpop.f32.mrf.mxu0
      %v1077 = vadd.f32 %v988, %v1076
      %v1078 = vpop.f32.mrf.mxu0
      %v1079 = vadd.f32 %v990, %v1078
      %1080 = vmatmul.bf16.gmra.mxu0 %v485
      %v1081 = vpop.f32.mrf.mxu0
      %v1082 = vadd.f32 %v993, %v1081
      %v1083 = vpop.f32.mrf.mxu0
      %v1084 = vadd.f32 %v995, %v1083
      %1085 = vmatmul.bf16.gmra.mxu0 %v489
      %v1086 = vpop.f32.mrf.mxu0
      %v1087 = vadd.f32 %v998, %v1086
      %v1088 = vpop.f32.mrf.mxu0
      %v1089 = vadd.f32 %v1000, %v1088
      %1090 = vmatmul.bf16.gmra.mxu0 %v493
      %v1091 = vpop.f32.mrf.mxu0
      %v1092 = vadd.f32 %v1003, %v1091
      %v1093 = vpop.f32.mrf.mxu0
      %v1094 = vadd.f32 %v1005, %v1093
      %1095 = vmatmul.bf16.gmra.mxu0 %v497
      %v1096 = vpop.f32.mrf.mxu0
      %v1097 = vadd.f32 %v1008, %v1096
      %v1098 = vpop.f32.mrf.mxu0
      %v1099 = vadd.f32 %v1010, %v1098
      %1100 = vmatmul.bf16.gmra.mxu0 %v501
      %v1101 = vpop.f32.mrf.mxu0
      %v1102 = vadd.f32 %v1013, %v1101
      %v1103 = vpop.f32.mrf.mxu0
      %v1104 = vadd.f32 %v1015, %v1103
      %1105 = vmatmul.bf16.gmra.mxu0 %v505
      %v1106 = vpop.f32.mrf.mxu0
      %v1107 = vadd.f32 %v1018, %v1106
      %v1108 = vpop.f32.mrf.mxu0
      %v1109 = vadd.f32 %v1020, %v1108
      %1110 = vmatmul.bf16.gmra.mxu0 %v509
      %v1111 = vpop.f32.mrf.mxu0
      %v1112 = vadd.f32 %v1023, %v1111
      %v1113 = vpop.f32.mrf.mxu0
      %v1114 = vadd.f32 %v1025, %v1113
      %1115 = vmatmul.bf16.gmra.mxu0 %v513
      %v1116 = vpop.f32.mrf.mxu0
      %v1117 = vadd.f32 %v1028, %v1116
      %v1118 = vpop.f32.mrf.mxu0
      %v1119 = vadd.f32 %v1030, %v1118
      %1120 = vmatmul.bf16.gmra.mxu0 %v517
      %v1121 = vpop.f32.mrf.mxu0
      %v1122 = vadd.f32 %v1033, %v1121
      %v1123 = vpop.f32.mrf.mxu0
      %v1124 = vadd.f32 %v1035, %v1123
      %1125 = vmatmul.bf16.gmra.mxu0 %v521
      %v1126 = vpop.f32.mrf.mxu0
      %v1127 = vadd.f32 %v1038, %v1126
      %v1128 = vpop.f32.mrf.mxu0
      %v1129 = vadd.f32 %v1040, %v1128
      %1130 = vmatmul.bf16.gmra.mxu0 %v525
      %v1131 = vpop.f32.mrf.mxu0
      %v1132 = vadd.f32 %v1043, %v1131
      %v1133 = vpop.f32.mrf.mxu0
      %v1134 = vadd.f32 %v1045, %v1133
      %1135 = vmatmul.bf16.gmra.mxu0 %v529
      %v1136 = vpop.f32.mrf.mxu0
      %v1137 = vadd.f32 %v1048, %v1136
      %v1138 = vpop.f32.mrf.mxu0
      %v1139 = vadd.f32 %v1050, %v1138
      %1140 = vmatmul.bf16.gmra.mxu0 %v533
      %v1141 = vpop.f32.mrf.mxu0
      %v1142 = vadd.f32 %v1053, %v1141
      %v1143 = vpop.f32.mrf.mxu0
      %v1144 = vadd.f32 %v1055, %v1143
      %1145 = vdwg.mxu0
      %v1146 = vmax.f32 %v1067, 0.0
      %v1147 = vmax.f32 %v1069, 0.0
      %v1148 = vmax.f32 %v1072, 0.0
      %v1149 = vmax.f32 %v1074, 0.0
      %v1150 = vmax.f32 %v1077, 0.0
      %v1151 = vmax.f32 %v1079, 0.0
      %v1152 = vmax.f32 %v1082, 0.0
      %v1153 = vmax.f32 %v1084, 0.0
      %v1154 = vmax.f32 %v1087, 0.0
      %v1155 = vmax.f32 %v1089, 0.0
      %v1156 = vmax.f32 %v1092, 0.0
      %v1157 = vmax.f32 %v1094, 0.0
      %v1158 = vmax.f32 %v1097, 0.0
      %v1159 = vmax.f32 %v1099, 0.0
      %v1160 = vmax.f32 %v1102, 0.0
      %v1161 = vmax.f32 %v1104, 0.0
      %v1162 = vmax.f32 %v1107, 0.0
      %v1163 = vmax.f32 %v1109, 0.0
      %v1164 = vmax.f32 %v1112, 0.0
      %v1165 = vmax.f32 %v1114, 0.0
      %v1166 = vmax.f32 %v1117, 0.0
      %v1167 = vmax.f32 %v1119, 0.0
      %v1168 = vmax.f32 %v1122, 0.0
      %v1169 = vmax.f32 %v1124, 0.0
      %v1170 = vmax.f32 %v1127, 0.0
      %v1171 = vmax.f32 %v1129, 0.0
      %v1172 = vmax.f32 %v1132, 0.0
      %v1173 = vmax.f32 %v1134, 0.0
      %v1174 = vmax.f32 %v1137, 0.0
      %v1175 = vmax.f32 %v1139, 0.0
      %v1176 = vmax.f32 %v1142, 0.0
      %v1177 = vmax.f32 %v1144, 0.0
      %1178 = vst [vmem:[%s148] sm:$0xff] %v1146
      %1179 = vst [vmem:[%s148 + $0x8] sm:$0xff] %v1147
      %1180 = vst [vmem:[%s148 + $0x10] sm:$0xff] %v1148
      %1181 = vst [vmem:[%s148 + $0x18] sm:$0xff] %v1149
      %1182 = vst [vmem:[%s148 + $0x20] sm:$0xff] %v1150
      %1183 = vst [vmem:[%s148 + $0x28] sm:$0xff] %v1151
      %1184 = vst [vmem:[%s148 + $0x30] sm:$0xff] %v1152
      %1185 = vst [vmem:[%s148 + $0x38] sm:$0xff] %v1153
      %1186 = vst [vmem:[%s148 + $0x40] sm:$0xff] %v1154
      %1187 = vst [vmem:[%s148 + $0x48] sm:$0xff] %v1155
      %1188 = vst [vmem:[%s148 + $0x50] sm:$0xff] %v1156
      %1189 = vst [vmem:[%s148 + $0x58] sm:$0xff] %v1157
      %1190 = vst [vmem:[%s148 + $0x60] sm:$0xff] %v1158
      %1191 = vst [vmem:[%s148 + $0x68] sm:$0xff] %v1159
      %1192 = vst [vmem:[%s148 + $0x70] sm:$0xff] %v1160
      %1193 = vst [vmem:[%s148 + $0x78] sm:$0xff] %v1161
      %1194 = vst [vmem:[%s148 + $0x80] sm:$0xff] %v1162
      %1195 = vst [vmem:[%s148 + $0x88] sm:$0xff] %v1163
      %1196 = vst [vmem:[%s148 + $0x90] sm:$0xff] %v1164
      %1197 = vst [vmem:[%s148 + $0x98] sm:$0xff] %v1165
      %1198 = vst [vmem:[%s148 + $0xa0] sm:$0xff] %v1166
      %1199 = vst [vmem:[%s148 + $0xa8] sm:$0xff] %v1167
      %1200 = vst [vmem:[%s148 + $0xb0] sm:$0xff] %v1168
      %1201 = vst [vmem:[%s148 + $0xb8] sm:$0xff] %v1169
      %1202 = vst [vmem:[%s148 + $0xc0] sm:$0xff] %v1170
      %1203 = vst [vmem:[%s148 + $0xc8] sm:$0xff] %v1171
      %1204 = vst [vmem:[%s148 + $0xd0] sm:$0xff] %v1172
      %1205 = vst [vmem:[%s148 + $0xd8] sm:$0xff] %v1173
      %1206 = vst [vmem:[%s148 + $0xe0] sm:$0xff] %v1174
      %1207 = vst [vmem:[%s148 + $0xe8] sm:$0xff] %v1175
      %1208 = vst [vmem:[%s148 + $0xf0] sm:$0xff] %v1176
      %1209 = vst [vmem:[%s148 + $0xf8] sm:$0xff] %v1177
      %s1210 = smul.u32 32, %s13
      %p1211 = scmp.lt.s32.totalorder %s1210, 63
      %s1212 = scalar_select %p1211, %s1210, 63
      %s1213 = smul.addr %s1212, 8
      %s1214 = scalar_lea.vmem %s2, %s1213
      // Predicated region
      $region29: #{gcn_forward.3} parent=27 // pred_check
        %p1215 = pneg %p78
      $region30: #{gcn_forward.3} parent=27 // pred_check_branch
        %1217 = sbr.rel (%p1215) target = $region32
      $region31: #{gcn_forward.3} parent=27 // pred_region
        %s1218 = smul.u32 32, %s13
      $region32: #{gcn_forward.3} parent=27 // pred_fallthru
        _
    $region28: #{gcn_forward.3} parent=5 // pred_fallthru
      _
    %p1219 = scmp.le.s32.totalorder 2, %s8
    // Predicated region
    $region33: #{gcn_forward.3} parent=5 // pred_check
      %p1220 = pneg %p1219
    $region34: #{gcn_forward.3} parent=5 // pred_check_branch
      %1222 = sbr.rel (%p1220) target = $region36
    $region35: #{gcn_forward.3} parent=5 // pred_region
      %s1223 = ssub.s32 %s8, 2
      // Predicated region
      $region37: #{gcn_forward.3} parent=35 // pred_check
        %p1224 = pneg %p84
      $region38: #{gcn_forward.3} parent=35 // pred_check_branch
        %1226 = sbr.rel (%p1224) target = $region40
      $region39: #{gcn_forward.3} parent=35 // pred_region
        %s1227 = smul.u32 32, %s14
        %p1228 = scmp.lt.s32.totalorder %s1227, 63
        %s1229 = scalar_select %p1228, %s1227, 63
        %s1230 = smul.addr %s1229, 8
        %s1231 = scalar_lea.vmem %s2, %s1230
      $region40: #{gcn_forward.3} parent=35 // pred_fallthru
        _
    $region36: #{gcn_forward.3} parent=5 // pred_fallthru
      _
  $region6: #{gcn_forward.3} parent=0 // loop_footer
    %s12 = sadd.s32 1, %s8
  $region7: #{gcn_forward.3} parent=0 // loop_footer_branch
    %7 = sbr.rel target = $region3
  $region8: #{gcn_forward.3} parent=0 // loop_exit
    _

// kernel: gcn_forward.2
$region0: #{gcn_forward.2}
  #allocation0 [shape = 'u32[]', space=smem, size = 0x4, offset = 0x4, fixed_abs, tag = 'smem constant byte address 0x4 - core index']
  #allocation1 [shape = 'u32[72,128]{1,0:T(1,128)}', space=vmem, size = 0x9000, scoped, tag = 'internal scratch']
  %s0 = inlined_call_operand.vmem [shape: bf16[512,512], index: 0, kind: input, shape index: {}]
  %s1 = inlined_call_operand.vmem [shape: bf16[512,128], index: 1, kind: input, shape index: {}]
  %s2 = inlined_call_operand.vmem [shape: bf16[128,128], index: 2, kind: input, shape index: {}]
  %s3 = inlined_call_operand.vmem [shape: bf16[512,128], index: 3, kind: output, shape index: {}]
  %s4 = sld [smem:[#allocation0]]
  $region45: #{gcn_forward.2} parent=0
    _
  %s6 = ssub.s32 1, %s4
  %s7 = scalar_select 0, %s6, %s4
  loop: start=0, step=1, limit=4
  $region2: #{gcn_forward.2} parent=0 // loop_pre_header
    _
  $region3: #{gcn_forward.2} parent=0 // loop_header
    %s9 = sphi 0, %s13
    %p10 = scmp.ge.s32.totalorder %s9, 4
    %s19 = sphi 0, %s21
    %s22 = sphi 0, %s19
    %s23 = sphi 0, %s22
    %s39 = sphi 0, %s23
    %s43 = sphi 0, %s43
    %s45 = sphi 0, %s43
    %s46 = sphi 0, %s45
    %s60 = sphi 0, %s46
    %s64 = sphi 0, %s64
    %s66 = sphi 0, %s64
    %s67 = sphi 0, %s66
    %s81 = sphi 0, %s67
    %s87 = sphi 0, %s89
    %s90 = sphi 0, %s87
    %s91 = sphi 0, %s90
    %s107 = sphi 0, %s91
  $region4: #{gcn_forward.2} parent=0 // loop_header_branch
    %12 = sbr.rel (%p10) target = $region8
  $region5: #{gcn_forward.2} parent=0 // loop_body
    %s14 = ssub.s32 %s9, 1
    %s15 = ssub.s32 %s9, 2
    %s16 = sadd.s32 %s9, 1
    %s17 = ssub.s32 %s9, %s16
    %p18 = scmp.eq.s32.totalorder %s17, 0
    %s20 = sadd.s32 %s19, 1
    %s21 = scalar_select %p18, %s19, %s20
    %p24 = pneg %p18
    %p25 = scmp.eq.s32.totalorder %s9, 1
    %p26 = por %p24, %p25
    %p27 = scmp.ne.s32.totalorder %s19, %s22
    %p28 = scmp.eq.s32.totalorder %s9, 0
    %p29 = por %p27, %p28
    %p30 = scmp.ne.s32.totalorder %s19, %s22
    %p31 = scmp.eq.s32.totalorder %s14, 1
    %p32 = por %p30, %p31
    %p33 = scmp.ne.s32.totalorder %s22, %s23
    %p34 = scmp.eq.s32.totalorder %s14, 0
    %p35 = por %p33, %p34
    %p36 = scmp.ne.s32.totalorder %s22, %s23
    %p37 = scmp.eq.s32.totalorder %s15, 1
    %p38 = por %p36, %p37
    %p40 = scmp.ne.s32.totalorder %s23, %s39
    %p41 = scmp.eq.s32.totalorder %s15, 0
    %p42 = por %p40, %p41
    %s44 = sadd.s32 %s43, 1
    %p47 = scmp.eq.s32.totalorder %s9, 1
    %p48 = scmp.ne.s32.totalorder %s43, %s45
    %p49 = scmp.eq.s32.totalorder %s9, 0
    %p50 = por %p48, %p49
    %p51 = scmp.ne.s32.totalorder %s43, %s45
    %p52 = scmp.eq.s32.totalorder %s14, 1
    %p53 = por %p51, %p52
    %p54 = scmp.ne.s32.totalorder %s45, %s46
    %p55 = scmp.eq.s32.totalorder %s14, 0
    %p56 = por %p54, %p55
    %p57 = scmp.ne.s32.totalorder %s45, %s46
    %p58 = scmp.eq.s32.totalorder %s15, 1
    %p59 = por %p57, %p58
    %p61 = scmp.ne.s32.totalorder %s46, %s60
    %p62 = scmp.eq.s32.totalorder %s15, 0
    %p63 = por %p61, %p62
    %s65 = sadd.s32 %s64, 1
    %p68 = scmp.eq.s32.totalorder %s9, 1
    %p69 = scmp.ne.s32.totalorder %s64, %s66
    %p70 = scmp.eq.s32.totalorder %s9, 0
    %p71 = por %p69, %p70
    %p72 = scmp.ne.s32.totalorder %s64, %s66
    %p73 = scmp.eq.s32.totalorder %s14, 1
    %p74 = por %p72, %p73
    %p75 = scmp.ne.s32.totalorder %s66, %s67
    %p76 = scmp.eq.s32.totalorder %s14, 0
    %p77 = por %p75, %p76
    %p78 = scmp.ne.s32.totalorder %s66, %s67
    %p79 = scmp.eq.s32.totalorder %s15, 1
    %p80 = por %p78, %p79
    %p82 = scmp.ne.s32.totalorder %s67, %s81
    %p83 = scmp.eq.s32.totalorder %s15, 0
    %p84 = por %p82, %p83
    %s85 = ssub.s32 %s9, %s16
    %p86 = scmp.eq.s32.totalorder %s85, 0
    %s88 = sadd.s32 %s87, 1
    %s89 = scalar_select %p86, %s87, %s88
    %p92 = pneg %p86
    %p93 = scmp.eq.s32.totalorder %s9, 1
    %p94 = por %p92, %p93
    %p95 = scmp.ne.s32.totalorder %s87, %s90
    %p96 = scmp.eq.s32.totalorder %s9, 0
    %p97 = por %p95, %p96
    %p98 = scmp.ne.s32.totalorder %s87, %s90
    %p99 = scmp.eq.s32.totalorder %s14, 1
    %p100 = por %p98, %p99
    %p101 = scmp.ne.s32.totalorder %s90, %s91
    %p102 = scmp.eq.s32.totalorder %s14, 0
    %p103 = por %p101, %p102
    %p104 = scmp.ne.s32.totalorder %s90, %s91
    %p105 = scmp.eq.s32.totalorder %s15, 1
    %p106 = por %p104, %p105
    %p108 = scmp.ne.s32.totalorder %s91, %s107
    %p109 = scmp.eq.s32.totalorder %s15, 0
    %p110 = por %p108, %p109
    %p111 = scmp.le.s32.totalorder 1, %s9
    %p112 = scmp.lt.s32.totalorder %s9, 3
    %p113 = pnand %p111, %p112
    %p114 = pneg %p113
    // Predicated region
    $region9: #{gcn_forward.2} parent=5 // pred_check
      _
    $region10: #{gcn_forward.2} parent=5 // pred_check_branch
      %116 = sbr.rel (%p113) target = $region12
    $region11: #{gcn_forward.2} parent=5 // pred_region
      %s117 = ssub.s32 %s9, 1
      // Predicated region
      $region13: #{gcn_forward.2} parent=11 // pred_check
        %p118 = pneg %p56
      $region14: #{gcn_forward.2} parent=11 // pred_check_branch
        %120 = sbr.rel (%p118) target = $region16
      $region15: #{gcn_forward.2} parent=11 // pred_region
        _
      $region16: #{gcn_forward.2} parent=11 // pred_fallthru
        _
      // Predicated region
      $region17: #{gcn_forward.2} parent=11 // pred_check
        %p121 = pneg %p77
      $region18: #{gcn_forward.2} parent=11 // pred_check_branch
        %123 = sbr.rel (%p121) target = $region20
      $region19: #{gcn_forward.2} parent=11 // pred_region
        _
      $region20: #{gcn_forward.2} parent=11 // pred_fallthru
        _
    $region12: #{gcn_forward.2} parent=5 // pred_fallthru
      _
    %p124 = scmp.lt.s32.totalorder %s9, 2
    // Predicated region
    $region21: #{gcn_forward.2} parent=5 // pred_check
      %p125 = pneg %p124
    $region22: #{gcn_forward.2} parent=5 // pred_check_branch
      %127 = sbr.rel (%p125) target = $region24
    $region23: #{gcn_forward.2} parent=5 // pred_region
      // Predicated region
      $region25: #{gcn_forward.2} parent=23 // pred_check
        %p128 = pneg %p29
      $region26: #{gcn_forward.2} parent=23 // pred_check_branch
        %130 = sbr.rel (%p128) target = $region28
      $region27: #{gcn_forward.2} parent=23 // pred_region
        %s131 = smul.u32 32, %s9
        %p132 = scmp.lt.s32.totalorder %s131, 63
        %s133 = scalar_select %p132, %s131, 63
        %s134 = smul.addr %s133, 4
        %s135 = smul.addr %s134, 4
        %s136 = scalar_lea.vmem %s0, %s135
        %s137 = smul.u32 32, %s9
      $region28: #{gcn_forward.2} parent=23 // pred_fallthru
        _
    $region24: #{gcn_forward.2} parent=5 // pred_fallthru
      _
    %p138 = scmp.le.s32.totalorder 1, %s9
    %p139 = scmp.lt.s32.totalorder %s9, 3
    %p140 = pnand %p138, %p139
    %p141 = pneg %p140
    // Predicated region
    $region29: #{gcn_forward.2} parent=5 // pred_check
      _
    $region30: #{gcn_forward.2} parent=5 // pred_check_branch
      %143 = sbr.rel (%p140) target = $region32
    $region31: #{gcn_forward.2} parent=5 // pred_region
      %s144 = ssub.s32 %s9, 1
      %s145 = smul.u32 32, %s14
      %p146 = scmp.lt.s32.totalorder %s145, 63
      %s147 = scalar_select %p146, %s145, 63
      %s148 = smul.addr %s147, 4
      %s149 = smul.addr %s148, 4
      %s150 = scalar_lea.vmem %s0, %s149
      %p151 = pneg %p35
      %p152 = pneg %p32
      %p153 = pneg %p56
      %p154 = pneg %p53
      %p155 = pneg %p77
      %p156 = pneg %p74
      %p157 = pneg %p103
      %p158 = pneg %p100
      %s159 = smul.u32 32, %s14
      %p160 = scmp.lt.s32.totalorder %s159, 63
      %s161 = scalar_select %p160, %s159, 63
      %s162 = smul.addr %s161, 4
      %s163 = scalar_lea.vmem %s3, %s162
      %s164 = smul.u32 32, %s14
      %p165 = scmp.lt.s32.totalorder %s164, 63
      %s166 = scalar_select %p165, %s164, 63
      %s167 = smul.addr %s166, 4
      %s168 = smul.addr %s167, 4
      %s169 = scalar_lea.vmem %s0, %s168
      %s170 = smul.u32 32, %s14
      %s171 = smul.u32 32, %s14
      %p172 = scmp.lt.s32.totalorder %s171, 63
      %s173 = scalar_select %p172, %s171, 63
      %s174 = smul.addr %s173, 4
      %s175 = scalar_lea.vmem %s3, %s174
      %s176 = smul.u32 32, %s14
      %v177 = vld [vmem:[%s169] sm:$0xff]
      %v178 = vld [vmem:[%s169 + $0x8] sm:$0xff]
      %v179 = vld [vmem:[%s169 + $0x10] sm:$0xff]
      %v180 = vld [vmem:[%s169 + $0x18] sm:$0xff]
      %v181 = vld [vmem:[%s169 + $0x20] sm:$0xff]
      %v182 = vld [vmem:[%s169 + $0x28] sm:$0xff]
      %v183 = vld [vmem:[%s169 + $0x30] sm:$0xff]
      %v184 = vld [vmem:[%s169 + $0x38] sm:$0xff]
      %v185 = vld [vmem:[%s169 + $0x40] sm:$0xff]
      %v186 = vld [vmem:[%s169 + $0x48] sm:$0xff]
      %v187 = vld [vmem:[%s169 + $0x50] sm:$0xff]
      %v188 = vld [vmem:[%s169 + $0x58] sm:$0xff]
      %v189 = vld [vmem:[%s169 + $0x60] sm:$0xff]
      %v190 = vld [vmem:[%s169 + $0x68] sm:$0xff]
      %v191 = vld [vmem:[%s169 + $0x70] sm:$0xff]
      %v192 = vld [vmem:[%s169 + $0x78] sm:$0xff]
      %v193 = vld [vmem:[%s169 + $0x80] sm:$0xff]
      %v194 = vld [vmem:[%s169 + $0x88] sm:$0xff]
      %v195 = vld [vmem:[%s169 + $0x90] sm:$0xff]
      %v196 = vld [vmem:[%s169 + $0x98] sm:$0xff]
      %v197 = vld [vmem:[%s169 + $0xa0] sm:$0xff]
      %v198 = vld [vmem:[%s169 + $0xa8] sm:$0xff]
      %v199 = vld [vmem:[%s169 + $0xb0] sm:$0xff]
      %v200 = vld [vmem:[%s169 + $0xb8] sm:$0xff]
      %v201 = vld [vmem:[%s169 + $0xc0] sm:$0xff]
      %v202 = vld [vmem:[%s169 + $0xc8] sm:$0xff]
      %v203 = vld [vmem:[%s169 + $0xd0] sm:$0xff]
      %v204 = vld [vmem:[%s169 + $0xd8] sm:$0xff]
      %v205 = vld [vmem:[%s169 + $0xe0] sm:$0xff]
      %v206 = vld [vmem:[%s169 + $0xe8] sm:$0xff]
      %v207 = vld [vmem:[%s169 + $0xf0] sm:$0xff]
      %v208 = vld [vmem:[%s169 + $0xf8] sm:$0xff]
      %v209 = vld [vmem:[%s169 + $0x100] sm:$0xff]
      %v210 = vld [vmem:[%s169 + $0x108] sm:$0xff]
      %v211 = vld [vmem:[%s169 + $0x110] sm:$0xff]
      %v212 = vld [vmem:[%s169 + $0x118] sm:$0xff]
      %v213 = vld [vmem:[%s169 + $0x120] sm:$0xff]
      %v214 = vld [vmem:[%s169 + $0x128] sm:$0xff]
      %v215 = vld [vmem:[%s169 + $0x130] sm:$0xff]
      %v216 = vld [vmem:[%s169 + $0x138] sm:$0xff]
      %v217 = vld [vmem:[%s169 + $0x140] sm:$0xff]
      %v218 = vld [vmem:[%s169 + $0x148] sm:$0xff]
      %v219 = vld [vmem:[%s169 + $0x150] sm:$0xff]
      %v220 = vld [vmem:[%s169 + $0x158] sm:$0xff]
      %v221 = vld [vmem:[%s169 + $0x160] sm:$0xff]
      %v222 = vld [vmem:[%s169 + $0x168] sm:$0xff]
      %v223 = vld [vmem:[%s169 + $0x170] sm:$0xff]
      %v224 = vld [vmem:[%s169 + $0x178] sm:$0xff]
      %v225 = vld [vmem:[%s169 + $0x180] sm:$0xff]
      %v226 = vld [vmem:[%s169 + $0x188] sm:$0xff]
      %v227 = vld [vmem:[%s169 + $0x190] sm:$0xff]
      %v228 = vld [vmem:[%s169 + $0x198] sm:$0xff]
      %v229 = vld [vmem:[%s169 + $0x1a0] sm:$0xff]
      %v230 = vld [vmem:[%s169 + $0x1a8] sm:$0xff]
      %v231 = vld [vmem:[%s169 + $0x1b0] sm:$0xff]
      %v232 = vld [vmem:[%s169 + $0x1b8] sm:$0xff]
      %v233 = vld [vmem:[%s169 + $0x1c0] sm:$0xff]
      %v234 = vld [vmem:[%s169 + $0x1c8] sm:$0xff]
      %v235 = vld [vmem:[%s169 + $0x1d0] sm:$0xff]
      %v236 = vld [vmem:[%s169 + $0x1d8] sm:$0xff]
      %v237 = vld [vmem:[%s169 + $0x1e0] sm:$0xff]
      %v238 = vld [vmem:[%s169 + $0x1e8] sm:$0xff]
      %v239 = vld [vmem:[%s169 + $0x1f0] sm:$0xff]
      %v240 = vld [vmem:[%s169 + $0x1f8] sm:$0xff]
      %v241 = vld [vmem:[%s1] sm:$0xf]
      %v242 = vld [vmem:[%s1 + $0x4] sm:$0xf]
      %v243 = vld [vmem:[%s1 + $0x8] sm:$0xf]
      %v244 = vld [vmem:[%s1 + $0xc] sm:$0xf]
      %v245 = vld [vmem:[%s1 + $0x10] sm:$0xf]
      %v246 = vld [vmem:[%s1 + $0x14] sm:$0xf]
      %v247 = vld [vmem:[%s1 + $0x18] sm:$0xf]
      %v248 = vld [vmem:[%s1 + $0x1c] sm:$0xf]
      %v249 = vld [vmem:[%s1 + $0x20] sm:$0xf]
      %v250 = vld [vmem:[%s1 + $0x24] sm:$0xf]
      %v251 = vld [vmem:[%s1 + $0x28] sm:$0xf]
      %v252 = vld [vmem:[%s1 + $0x2c] sm:$0xf]
      %v253 = vld [vmem:[%s1 + $0x30] sm:$0xf]
      %v254 = vld [vmem:[%s1 + $0x34] sm:$0xf]
      %v255 = vld [vmem:[%s1 + $0x38] sm:$0xf]
      %v256 = vld [vmem:[%s1 + $0x3c] sm:$0xf]
      %v257 = vld [vmem:[%s1 + $0x40] sm:$0xf]
      %v258 = vld [vmem:[%s1 + $0x44] sm:$0xf]
      %v259 = vld [vmem:[%s1 + $0x48] sm:$0xf]
      %v260 = vld [vmem:[%s1 + $0x4c] sm:$0xf]
      %v261 = vld [vmem:[%s1 + $0x50] sm:$0xf]
      %v262 = vld [vmem:[%s1 + $0x54] sm:$0xf]
      %v263 = vld [vmem:[%s1 + $0x58] sm:$0xf]
      %v264 = vld [vmem:[%s1 + $0x5c] sm:$0xf]
      %v265 = vld [vmem:[%s1 + $0x60] sm:$0xf]
      %v266 = vld [vmem:[%s1 + $0x64] sm:$0xf]
      %v267 = vld [vmem:[%s1 + $0x68] sm:$0xf]
      %v268 = vld [vmem:[%s1 + $0x6c] sm:$0xf]
      %v269 = vld [vmem:[%s1 + $0x70] sm:$0xf]
      %v270 = vld [vmem:[%s1 + $0x74] sm:$0xf]
      %v271 = vld [vmem:[%s1 + $0x78] sm:$0xf]
      %v272 = vld [vmem:[%s1 + $0x7c] sm:$0xf]
      %v273 = vld [vmem:[%s1 + $0x80] sm:$0xf]
      %v274 = vld [vmem:[%s1 + $0x84] sm:$0xf]
      %v275 = vld [vmem:[%s1 + $0x88] sm:$0xf]
      %v276 = vld [vmem:[%s1 + $0x8c] sm:$0xf]
      %v277 = vld [vmem:[%s1 + $0x90] sm:$0xf]
      %v278 = vld [vmem:[%s1 + $0x94] sm:$0xf]
      %v279 = vld [vmem:[%s1 + $0x98] sm:$0xf]
      %v280 = vld [vmem:[%s1 + $0x9c] sm:$0xf]
      %v281 = vld [vmem:[%s1 + $0xa0] sm:$0xf]
      %v282 = vld [vmem:[%s1 + $0xa4] sm:$0xf]
      %v283 = vld [vmem:[%s1 + $0xa8] sm:$0xf]
      %v284 = vld [vmem:[%s1 + $0xac] sm:$0xf]
      %v285 = vld [vmem:[%s1 + $0xb0] sm:$0xf]
      %v286 = vld [vmem:[%s1 + $0xb4] sm:$0xf]
      %v287 = vld [vmem:[%s1 + $0xb8] sm:$0xf]
      %v288 = vld [vmem:[%s1 + $0xbc] sm:$0xf]
      %v289 = vld [vmem:[%s1 + $0xc0] sm:$0xf]
      %v290 = vld [vmem:[%s1 + $0xc4] sm:$0xf]
      %v291 = vld [vmem:[%s1 + $0xc8] sm:$0xf]
      %v292 = vld [vmem:[%s1 + $0xcc] sm:$0xf]
      %v293 = vld [vmem:[%s1 + $0xd0] sm:$0xf]
      %v294 = vld [vmem:[%s1 + $0xd4] sm:$0xf]
      %v295 = vld [vmem:[%s1 + $0xd8] sm:$0xf]
      %v296 = vld [vmem:[%s1 + $0xdc] sm:$0xf]
      %v297 = vld [vmem:[%s1 + $0xe0] sm:$0xf]
      %v298 = vld [vmem:[%s1 + $0xe4] sm:$0xf]
      %v299 = vld [vmem:[%s1 + $0xe8] sm:$0xf]
      %v300 = vld [vmem:[%s1 + $0xec] sm:$0xf]
      %v301 = vld [vmem:[%s1 + $0xf0] sm:$0xf]
      %v302 = vld [vmem:[%s1 + $0xf4] sm:$0xf]
      %v303 = vld [vmem:[%s1 + $0xf8] sm:$0xf]
      %v304 = vld [vmem:[%s1 + $0xfc] sm:$0xf]
      %v369 = vunpack.c.l.b16 %v177
      %v370 = vunpack.c.h.b16 %v177
      %v371 = vunpack.c.l.b16 %v178
      %v372 = vunpack.c.h.b16 %v178
      %v373 = vunpack.c.l.b16 %v179
      %v374 = vunpack.c.h.b16 %v179
      %v375 = vunpack.c.l.b16 %v180
      %v376 = vunpack.c.h.b16 %v180
      %v377 = vunpack.c.l.b16 %v181
      %v378 = vunpack.c.h.b16 %v181
      %v379 = vunpack.c.l.b16 %v182
      %v380 = vunpack.c.h.b16 %v182
      %v381 = vunpack.c.l.b16 %v183
      %v382 = vunpack.c.h.b16 %v183
      %v383 = vunpack.c.l.b16 %v184
      %v384 = vunpack.c.h.b16 %v184
      %v385 = vunpack.c.l.b16 %v185
      %v386 = vunpack.c.h.b16 %v185
      %v387 = vunpack.c.l.b16 %v186
      %v388 = vunpack.c.h.b16 %v186
      %v389 = vunpack.c.l.b16 %v187
      %v390 = vunpack.c.h.b16 %v187
      %v391 = vunpack.c.l.b16 %v188
      %v392 = vunpack.c.h.b16 %v188
      %v393 = vunpack.c.l.b16 %v189
      %v394 = vunpack.c.h.b16 %v189
      %v395 = vunpack.c.l.b16 %v190
      %v396 = vunpack.c.h.b16 %v190
      %v397 = vunpack.c.l.b16 %v191
      %v398 = vunpack.c.h.b16 %v191
      %v399 = vunpack.c.l.b16 %v192
      %v400 = vunpack.c.h.b16 %v192
      %v401 = vunpack.c.l.b16 %v193
      %v402 = vunpack.c.h.b16 %v193
      %v403 = vunpack.c.l.b16 %v194
      %v404 = vunpack.c.h.b16 %v194
      %v405 = vunpack.c.l.b16 %v195
      %v406 = vunpack.c.h.b16 %v195
      %v407 = vunpack.c.l.b16 %v196
      %v408 = vunpack.c.h.b16 %v196
      %v409 = vunpack.c.l.b16 %v197
      %v410 = vunpack.c.h.b16 %v197
      %v411 = vunpack.c.l.b16 %v198
      %v412 = vunpack.c.h.b16 %v198
      %v413 = vunpack.c.l.b16 %v199
      %v414 = vunpack.c.h.b16 %v199
      %v415 = vunpack.c.l.b16 %v200
      %v416 = vunpack.c.h.b16 %v200
      %v417 = vunpack.c.l.b16 %v201
      %v418 = vunpack.c.h.b16 %v201
      %v419 = vunpack.c.l.b16 %v202
      %v420 = vunpack.c.h.b16 %v202
      %v421 = vunpack.c.l.b16 %v203
      %v422 = vunpack.c.h.b16 %v203
      %v423 = vunpack.c.l.b16 %v204
      %v424 = vunpack.c.h.b16 %v204
      %v425 = vunpack.c.l.b16 %v205
      %v426 = vunpack.c.h.b16 %v205
      %v427 = vunpack.c.l.b16 %v206
      %v428 = vunpack.c.h.b16 %v206
      %v429 = vunpack.c.l.b16 %v207
      %v430 = vunpack.c.h.b16 %v207
      %v431 = vunpack.c.l.b16 %v208
      %v432 = vunpack.c.h.b16 %v208
      %v433 = vunpack.c.l.b16 %v209
      %v434 = vunpack.c.h.b16 %v209
      %v435 = vunpack.c.l.b16 %v210
      %v436 = vunpack.c.h.b16 %v210
      %v437 = vunpack.c.l.b16 %v211
      %v438 = vunpack.c.h.b16 %v211
      %v439 = vunpack.c.l.b16 %v212
      %v440 = vunpack.c.h.b16 %v212
      %v441 = vunpack.c.l.b16 %v213
      %v442 = vunpack.c.h.b16 %v213
      %v443 = vunpack.c.l.b16 %v214
      %v444 = vunpack.c.h.b16 %v214
      %v445 = vunpack.c.l.b16 %v215
      %v446 = vunpack.c.h.b16 %v215
      %v447 = vunpack.c.l.b16 %v216
      %v448 = vunpack.c.h.b16 %v216
      %v449 = vunpack.c.l.b16 %v217
      %v450 = vunpack.c.h.b16 %v217
      %v451 = vunpack.c.l.b16 %v218
      %v452 = vunpack.c.h.b16 %v218
      %v453 = vunpack.c.l.b16 %v219
      %v454 = vunpack.c.h.b16 %v219
      %v455 = vunpack.c.l.b16 %v220
      %v456 = vunpack.c.h.b16 %v220
      %v457 = vunpack.c.l.b16 %v221
      %v458 = vunpack.c.h.b16 %v221
      %v459 = vunpack.c.l.b16 %v222
      %v460 = vunpack.c.h.b16 %v222
      %v461 = vunpack.c.l.b16 %v223
      %v462 = vunpack.c.h.b16 %v223
      %v463 = vunpack.c.l.b16 %v224
      %v464 = vunpack.c.h.b16 %v224
      %v465 = vunpack.c.l.b16 %v225
      %v466 = vunpack.c.h.b16 %v225
      %v467 = vunpack.c.l.b16 %v226
      %v468 = vunpack.c.h.b16 %v226
      %v469 = vunpack.c.l.b16 %v227
      %v470 = vunpack.c.h.b16 %v227
      %v471 = vunpack.c.l.b16 %v228
      %v472 = vunpack.c.h.b16 %v228
      %v473 = vunpack.c.l.b16 %v229
      %v474 = vunpack.c.h.b16 %v229
      %v475 = vunpack.c.l.b16 %v230
      %v476 = vunpack.c.h.b16 %v230
      %v477 = vunpack.c.l.b16 %v231
      %v478 = vunpack.c.h.b16 %v231
      %v479 = vunpack.c.l.b16 %v232
      %v480 = vunpack.c.h.b16 %v232
      %v481 = vunpack.c.l.b16 %v233
      %v482 = vunpack.c.h.b16 %v233
      %v483 = vunpack.c.l.b16 %v234
      %v484 = vunpack.c.h.b16 %v234
      %v485 = vunpack.c.l.b16 %v235
      %v486 = vunpack.c.h.b16 %v235
      %v487 = vunpack.c.l.b16 %v236
      %v488 = vunpack.c.h.b16 %v236
      %v489 = vunpack.c.l.b16 %v237
      %v490 = vunpack.c.h.b16 %v237
      %v491 = vunpack.c.l.b16 %v238
      %v492 = vunpack.c.h.b16 %v238
      %v493 = vunpack.c.l.b16 %v239
      %v494 = vunpack.c.h.b16 %v239
      %v495 = vunpack.c.l.b16 %v240
      %v496 = vunpack.c.h.b16 %v240
      %v497 = vpack.c.b16 %v373, %v369
      %v498 = vpack.c.b16 %v374, %v370
      %v499 = vpack.c.b16 %v375, %v371
      %v500 = vpack.c.b16 %v376, %v372
      %v501 = vpack.c.b16 %v381, %v377
      %v502 = vpack.c.b16 %v382, %v378
      %v503 = vpack.c.b16 %v383, %v379
      %v504 = vpack.c.b16 %v384, %v380
      %v505 = vpack.c.b16 %v389, %v385
      %v506 = vpack.c.b16 %v390, %v386
      %v507 = vpack.c.b16 %v391, %v387
      %v508 = vpack.c.b16 %v392, %v388
      %v509 = vpack.c.b16 %v397, %v393
      %v510 = vpack.c.b16 %v398, %v394
      %v511 = vpack.c.b16 %v399, %v395
      %v512 = vpack.c.b16 %v400, %v396
      %v513 = vpack.c.b16 %v405, %v401
      %v514 = vpack.c.b16 %v406, %v402
      %v515 = vpack.c.b16 %v407, %v403
      %v516 = vpack.c.b16 %v408, %v404
      %v517 = vpack.c.b16 %v413, %v409
      %v518 = vpack.c.b16 %v414, %v410
      %v519 = vpack.c.b16 %v415, %v411
      %v520 = vpack.c.b16 %v416, %v412
      %v521 = vpack.c.b16 %v421, %v417
      %v522 = vpack.c.b16 %v422, %v418
      %v523 = vpack.c.b16 %v423, %v419
      %v524 = vpack.c.b16 %v424, %v420
      %v525 = vpack.c.b16 %v429, %v425
      %v526 = vpack.c.b16 %v430, %v426
      %v527 = vpack.c.b16 %v431, %v427
      %v528 = vpack.c.b16 %v432, %v428
      %v529 = vpack.c.b16 %v437, %v433
      %v530 = vpack.c.b16 %v438, %v434
      %v531 = vpack.c.b16 %v439, %v435
      %v532 = vpack.c.b16 %v440, %v436
      %v533 = vpack.c.b16 %v445, %v441
      %v534 = vpack.c.b16 %v446, %v442
      %v535 = vpack.c.b16 %v447, %v443
      %v536 = vpack.c.b16 %v448, %v444
      %v537 = vpack.c.b16 %v453, %v449
      %v538 = vpack.c.b16 %v454, %v450
      %v539 = vpack.c.b16 %v455, %v451
      %v540 = vpack.c.b16 %v456, %v452
      %v541 = vpack.c.b16 %v461, %v457
      %v542 = vpack.c.b16 %v462, %v458
      %v543 = vpack.c.b16 %v463, %v459
      %v544 = vpack.c.b16 %v464, %v460
      %v545 = vpack.c.b16 %v469, %v465
      %v546 = vpack.c.b16 %v470, %v466
      %v547 = vpack.c.b16 %v471, %v467
      %v548 = vpack.c.b16 %v472, %v468
      %v549 = vpack.c.b16 %v477, %v473
      %v550 = vpack.c.b16 %v478, %v474
      %v551 = vpack.c.b16 %v479, %v475
      %v552 = vpack.c.b16 %v480, %v476
      %v553 = vpack.c.b16 %v485, %v481
      %v554 = vpack.c.b16 %v486, %v482
      %v555 = vpack.c.b16 %v487, %v483
      %v556 = vpack.c.b16 %v488, %v484
      %v557 = vpack.c.b16 %v493, %v489
      %v558 = vpack.c.b16 %v494, %v490
      %v559 = vpack.c.b16 %v495, %v491
      %v560 = vpack.c.b16 %v496, %v492
      %v689 = vunpack.c.l.b16 %v241
      %v690 = vunpack.c.l.b16 %v242
      %v691 = vunpack.c.l.b16 %v243
      %v692 = vunpack.c.l.b16 %v244
      %v693 = vunpack.c.l.b16 %v245
      %v694 = vunpack.c.l.b16 %v246
      %v695 = vunpack.c.l.b16 %v247
      %v696 = vunpack.c.l.b16 %v248
      %v697 = vunpack.c.l.b16 %v249
      %v698 = vunpack.c.l.b16 %v250
      %v699 = vunpack.c.l.b16 %v251
      %v700 = vunpack.c.l.b16 %v252
      %v701 = vunpack.c.l.b16 %v253
      %v702 = vunpack.c.l.b16 %v254
      %v703 = vunpack.c.l.b16 %v255
      %v704 = vunpack.c.l.b16 %v256
      %v705 = vunpack.c.l.b16 %v257
      %v706 = vunpack.c.l.b16 %v258
      %v707 = vunpack.c.l.b16 %v259
      %v708 = vunpack.c.l.b16 %v260
      %v709 = vunpack.c.l.b16 %v261
      %v710 = vunpack.c.l.b16 %v262
      %v711 = vunpack.c.l.b16 %v263
      %v712 = vunpack.c.l.b16 %v264
      %v713 = vunpack.c.l.b16 %v265
      %v714 = vunpack.c.l.b16 %v266
      %v715 = vunpack.c.l.b16 %v267
      %v716 = vunpack.c.l.b16 %v268
      %v717 = vunpack.c.l.b16 %v269
      %v718 = vunpack.c.l.b16 %v270
      %v719 = vunpack.c.l.b16 %v271
      %v720 = vunpack.c.l.b16 %v272
      %v721 = vunpack.c.l.b16 %v273
      %v722 = vunpack.c.l.b16 %v274
      %v723 = vunpack.c.l.b16 %v275
      %v724 = vunpack.c.l.b16 %v276
      %v725 = vunpack.c.l.b16 %v277
      %v726 = vunpack.c.l.b16 %v278
      %v727 = vunpack.c.l.b16 %v279
      %v728 = vunpack.c.l.b16 %v280
      %v729 = vunpack.c.l.b16 %v281
      %v730 = vunpack.c.l.b16 %v282
      %v731 = vunpack.c.l.b16 %v283
      %v732 = vunpack.c.l.b16 %v284
      %v733 = vunpack.c.l.b16 %v285
      %v734 = vunpack.c.l.b16 %v286
      %v735 = vunpack.c.l.b16 %v287
      %v736 = vunpack.c.l.b16 %v288
      %v737 = vunpack.c.l.b16 %v289
      %v738 = vunpack.c.l.b16 %v290
      %v739 = vunpack.c.l.b16 %v291
      %v740 = vunpack.c.l.b16 %v292
      %v741 = vunpack.c.l.b16 %v293
      %v742 = vunpack.c.l.b16 %v294
      %v743 = vunpack.c.l.b16 %v295
      %v744 = vunpack.c.l.b16 %v296
      %v745 = vunpack.c.l.b16 %v297
      %v746 = vunpack.c.l.b16 %v298
      %v747 = vunpack.c.l.b16 %v299
      %v748 = vunpack.c.l.b16 %v300
      %v749 = vunpack.c.l.b16 %v301
      %v750 = vunpack.c.l.b16 %v302
      %v751 = vunpack.c.l.b16 %v303
      %v752 = vunpack.c.l.b16 %v304
      %v753 = vpack.c.b16 %v690, %v689
      %v754 = vpack.c.b16 %v692, %v691
      %v755 = vpack.c.b16 %v694, %v693
      %v756 = vpack.c.b16 %v696, %v695
      %v757 = vpack.c.b16 %v698, %v697
      %v758 = vpack.c.b16 %v700, %v699
      %v759 = vpack.c.b16 %v702, %v701
      %v760 = vpack.c.b16 %v704, %v703
      %v761 = vpack.c.b16 %v706, %v705
      %v762 = vpack.c.b16 %v708, %v707
      %v763 = vpack.c.b16 %v710, %v709
      %v764 = vpack.c.b16 %v712, %v711
      %v765 = vpack.c.b16 %v714, %v713
      %v766 = vpack.c.b16 %v716, %v715
      %v767 = vpack.c.b16 %v718, %v717
      %v768 = vpack.c.b16 %v720, %v719
      %v769 = vpack.c.b16 %v722, %v721
      %v770 = vpack.c.b16 %v724, %v723
      %v771 = vpack.c.b16 %v726, %v725
      %v772 = vpack.c.b16 %v728, %v727
      %v773 = vpack.c.b16 %v730, %v729
      %v774 = vpack.c.b16 %v732, %v731
      %v775 = vpack.c.b16 %v734, %v733
      %v776 = vpack.c.b16 %v736, %v735
      %v777 = vpack.c.b16 %v738, %v737
      %v778 = vpack.c.b16 %v740, %v739
      %v779 = vpack.c.b16 %v742, %v741
      %v780 = vpack.c.b16 %v744, %v743
      %v781 = vpack.c.b16 %v746, %v745
      %v782 = vpack.c.b16 %v748, %v747
      %v783 = vpack.c.b16 %v750, %v749
      %v784 = vpack.c.b16 %v752, %v751
      %817 = vmatpush.bf16.msra.mxu0 %v760
      %818 = vmatpush.bf16.msra.mxu0 %v759
      %819 = vmatpush.bf16.msra.mxu0 %v758
      %820 = vmatpush.bf16.msra.mxu0 %v757
      %821 = vmatpush.bf16.msra.mxu0 %v756
      %822 = vmatpush.bf16.msra.mxu0 %v755
      %823 = vmatpush.bf16.msra.mxu0 %v754
      %824 = vmatpush.bf16.msra.mxu0 %v753
      %825 = vmatmul.bf16.gmra.mxu0 %v497
      %v826 = vpop.f32.mrf.mxu0
      %v827 = vadd.f32 0.0, %v826
      %v828 = vpop.f32.mrf.mxu0
      %v829 = vadd.f32 0.0, %v828
      %830 = vmatmul.bf16.gmra.mxu0 %v501
      %v831 = vpop.f32.mrf.mxu0
      %v832 = vadd.f32 0.0, %v831
      %v833 = vpop.f32.mrf.mxu0
      %v834 = vadd.f32 0.0, %v833
      %835 = vmatmul.bf16.gmra.mxu0 %v505
      %v836 = vpop.f32.mrf.mxu0
      %v837 = vadd.f32 0.0, %v836
      %v838 = vpop.f32.mrf.mxu0
      %v839 = vadd.f32 0.0, %v838
      %840 = vmatmul.bf16.gmra.mxu0 %v509
      %v841 = vpop.f32.mrf.mxu0
      %v842 = vadd.f32 0.0, %v841
      %v843 = vpop.f32.mrf.mxu0
      %v844 = vadd.f32 0.0, %v843
      %845 = vmatmul.bf16.gmra.mxu0 %v513
      %v846 = vpop.f32.mrf.mxu0
      %v847 = vadd.f32 0.0, %v846
      %v848 = vpop.f32.mrf.mxu0
      %v849 = vadd.f32 0.0, %v848
      %850 = vmatmul.bf16.gmra.mxu0 %v517
      %v851 = vpop.f32.mrf.mxu0
      %v852 = vadd.f32 0.0, %v851
      %v853 = vpop.f32.mrf.mxu0
      %v854 = vadd.f32 0.0, %v853
      %855 = vmatmul.bf16.gmra.mxu0 %v521
      %v856 = vpop.f32.mrf.mxu0
      %v857 = vadd.f32 0.0, %v856
      %v858 = vpop.f32.mrf.mxu0
      %v859 = vadd.f32 0.0, %v858
      %860 = vmatmul.bf16.gmra.mxu0 %v525
      %v861 = vpop.f32.mrf.mxu0
      %v862 = vadd.f32 0.0, %v861
      %v863 = vpop.f32.mrf.mxu0
      %v864 = vadd.f32 0.0, %v863
      %865 = vmatmul.bf16.gmra.mxu0 %v529
      %v866 = vpop.f32.mrf.mxu0
      %v867 = vadd.f32 0.0, %v866
      %v868 = vpop.f32.mrf.mxu0
      %v869 = vadd.f32 0.0, %v868
      %870 = vmatmul.bf16.gmra.mxu0 %v533
      %v871 = vpop.f32.mrf.mxu0
      %v872 = vadd.f32 0.0, %v871
      %v873 = vpop.f32.mrf.mxu0
      %v874 = vadd.f32 0.0, %v873
      %875 = vmatmul.bf16.gmra.mxu0 %v537
      %v876 = vpop.f32.mrf.mxu0
      %v877 = vadd.f32 0.0, %v876
      %v878 = vpop.f32.mrf.mxu0
      %v879 = vadd.f32 0.0, %v878
      %880 = vmatmul.bf16.gmra.mxu0 %v541
      %v881 = vpop.f32.mrf.mxu0
      %v882 = vadd.f32 0.0, %v881
      %v883 = vpop.f32.mrf.mxu0
      %v884 = vadd.f32 0.0, %v883
      %885 = vmatmul.bf16.gmra.mxu0 %v545
      %v886 = vpop.f32.mrf.mxu0
      %v887 = vadd.f32 0.0, %v886
      %v888 = vpop.f32.mrf.mxu0
      %v889 = vadd.f32 0.0, %v888
      %890 = vmatmul.bf16.gmra.mxu0 %v549
      %v891 = vpop.f32.mrf.mxu0
      %v892 = vadd.f32 0.0, %v891
      %v893 = vpop.f32.mrf.mxu0
      %v894 = vadd.f32 0.0, %v893
      %895 = vmatmul.bf16.gmra.mxu0 %v553
      %v896 = vpop.f32.mrf.mxu0
      %v897 = vadd.f32 0.0, %v896
      %v898 = vpop.f32.mrf.mxu0
      %v899 = vadd.f32 0.0, %v898
      %900 = vmatmul.bf16.gmra.mxu0 %v557
      %v901 = vpop.f32.mrf.mxu0
      %v902 = vadd.f32 0.0, %v901
      %v903 = vpop.f32.mrf.mxu0
      %v904 = vadd.f32 0.0, %v903
      %905 = vdwg.mxu0
      %906 = vmatpush.bf16.msra.mxu0 %v768
      %907 = vmatpush.bf16.msra.mxu0 %v767
      %908 = vmatpush.bf16.msra.mxu0 %v766
      %909 = vmatpush.bf16.msra.mxu0 %v765
      %910 = vmatpush.bf16.msra.mxu0 %v764
      %911 = vmatpush.bf16.msra.mxu0 %v763
      %912 = vmatpush.bf16.msra.mxu0 %v762
      %913 = vmatpush.bf16.msra.mxu0 %v761
      %914 = vmatmul.bf16.gmra.mxu0 %v498
      %v915 = vpop.f32.mrf.mxu0
      %v916 = vadd.f32 %v827, %v915
      %v917 = vpop.f32.mrf.mxu0
      %v918 = vadd.f32 %v829, %v917
      %919 = vmatmul.bf16.gmra.mxu0 %v502
      %v920 = vpop.f32.mrf.mxu0
      %v921 = vadd.f32 %v832, %v920
      %v922 = vpop.f32.mrf.mxu0
      %v923 = vadd.f32 %v834, %v922
      %924 = vmatmul.bf16.gmra.mxu0 %v506
      %v925 = vpop.f32.mrf.mxu0
      %v926 = vadd.f32 %v837, %v925
      %v927 = vpop.f32.mrf.mxu0
      %v928 = vadd.f32 %v839, %v927
      %929 = vmatmul.bf16.gmra.mxu0 %v510
      %v930 = vpop.f32.mrf.mxu0
      %v931 = vadd.f32 %v842, %v930
      %v932 = vpop.f32.mrf.mxu0
      %v933 = vadd.f32 %v844, %v932
      %934 = vmatmul.bf16.gmra.mxu0 %v514
      %v935 = vpop.f32.mrf.mxu0
      %v936 = vadd.f32 %v847, %v935
      %v937 = vpop.f32.mrf.mxu0
      %v938 = vadd.f32 %v849, %v937
      %939 = vmatmul.bf16.gmra.mxu0 %v518
      %v940 = vpop.f32.mrf.mxu0
      %v941 = vadd.f32 %v852, %v940
      %v942 = vpop.f32.mrf.mxu0
      %v943 = vadd.f32 %v854, %v942
      %944 = vmatmul.bf16.gmra.mxu0 %v522
      %v945 = vpop.f32.mrf.mxu0
      %v946 = vadd.f32 %v857, %v945
      %v947 = vpop.f32.mrf.mxu0
      %v948 = vadd.f32 %v859, %v947
      %949 = vmatmul.bf16.gmra.mxu0 %v526
      %v950 = vpop.f32.mrf.mxu0
      %v951 = vadd.f32 %v862, %v950
      %v952 = vpop.f32.mrf.mxu0
      %v953 = vadd.f32 %v864, %v952
      %954 = vmatmul.bf16.gmra.mxu0 %v530
      %v955 = vpop.f32.mrf.mxu0
      %v956 = vadd.f32 %v867, %v955
      %v957 = vpop.f32.mrf.mxu0
      %v958 = vadd.f32 %v869, %v957
      %959 = vmatmul.bf16.gmra.mxu0 %v534
      %v960 = vpop.f32.mrf.mxu0
      %v961 = vadd.f32 %v872, %v960
      %v962 = vpop.f32.mrf.mxu0
      %v963 = vadd.f32 %v874, %v962
      %964 = vmatmul.bf16.gmra.mxu0 %v538
      %v965 = vpop.f32.mrf.mxu0
      %v966 = vadd.f32 %v877, %v965
      %v967 = vpop.f32.mrf.mxu0
      %v968 = vadd.f32 %v879, %v967
      %969 = vmatmul.bf16.gmra.mxu0 %v542
      %v970 = vpop.f32.mrf.mxu0
      %v971 = vadd.f32 %v882, %v970
      %v972 = vpop.f32.mrf.mxu0
      %v973 = vadd.f32 %v884, %v972
      %974 = vmatmul.bf16.gmra.mxu0 %v546
      %v975 = vpop.f32.mrf.mxu0
      %v976 = vadd.f32 %v887, %v975
      %v977 = vpop.f32.mrf.mxu0
      %v978 = vadd.f32 %v889, %v977
      %979 = vmatmul.bf16.gmra.mxu0 %v550
      %v980 = vpop.f32.mrf.mxu0
      %v981 = vadd.f32 %v892, %v980
      %v982 = vpop.f32.mrf.mxu0
      %v983 = vadd.f32 %v894, %v982
      %984 = vmatmul.bf16.gmra.mxu0 %v554
      %v985 = vpop.f32.mrf.mxu0
      %v986 = vadd.f32 %v897, %v985
      %v987 = vpop.f32.mrf.mxu0
      %v988 = vadd.f32 %v899, %v987
      %989 = vmatmul.bf16.gmra.mxu0 %v558
      %v990 = vpop.f32.mrf.mxu0
      %v991 = vadd.f32 %v902, %v990
      %v992 = vpop.f32.mrf.mxu0
      %v993 = vadd.f32 %v904, %v992
      %994 = vdwg.mxu0
      %995 = vmatpush.bf16.msra.mxu0 %v776
      %996 = vmatpush.bf16.msra.mxu0 %v775
      %997 = vmatpush.bf16.msra.mxu0 %v774
      %998 = vmatpush.bf16.msra.mxu0 %v773
      %999 = vmatpush.bf16.msra.mxu0 %v772
      %1000 = vmatpush.bf16.msra.mxu0 %v771
      %1001 = vmatpush.bf16.msra.mxu0 %v770
      %1002 = vmatpush.bf16.msra.mxu0 %v769
      %1003 = vmatmul.bf16.gmra.mxu0 %v499
      %v1004 = vpop.f32.mrf.mxu0
      %v1005 = vadd.f32 %v916, %v1004
      %v1006 = vpop.f32.mrf.mxu0
      %v1007 = vadd.f32 %v918, %v1006
      %1008 = vmatmul.bf16.gmra.mxu0 %v503
      %v1009 = vpop.f32.mrf.mxu0
      %v1010 = vadd.f32 %v921, %v1009
      %v1011 = vpop.f32.mrf.mxu0
      %v1012 = vadd.f32 %v923, %v1011
      %1013 = vmatmul.bf16.gmra.mxu0 %v507
      %v1014 = vpop.f32.mrf.mxu0
      %v1015 = vadd.f32 %v926, %v1014
      %v1016 = vpop.f32.mrf.mxu0
      %v1017 = vadd.f32 %v928, %v1016
      %1018 = vmatmul.bf16.gmra.mxu0 %v511
      %v1019 = vpop.f32.mrf.mxu0
      %v1020 = vadd.f32 %v931, %v1019
      %v1021 = vpop.f32.mrf.mxu0
      %v1022 = vadd.f32 %v933, %v1021
      %1023 = vmatmul.bf16.gmra.mxu0 %v515
      %v1024 = vpop.f32.mrf.mxu0
      %v1025 = vadd.f32 %v936, %v1024
      %v1026 = vpop.f32.mrf.mxu0
      %v1027 = vadd.f32 %v938, %v1026
      %1028 = vmatmul.bf16.gmra.mxu0 %v519
      %v1029 = vpop.f32.mrf.mxu0
      %v1030 = vadd.f32 %v941, %v1029
      %v1031 = vpop.f32.mrf.mxu0
      %v1032 = vadd.f32 %v943, %v1031
      %1033 = vmatmul.bf16.gmra.mxu0 %v523
      %v1034 = vpop.f32.mrf.mxu0
      %v1035 = vadd.f32 %v946, %v1034
      %v1036 = vpop.f32.mrf.mxu0
      %v1037 = vadd.f32 %v948, %v1036
      %1038 = vmatmul.bf16.gmra.mxu0 %v527
      %v1039 = vpop.f32.mrf.mxu0
      %v1040 = vadd.f32 %v951, %v1039
      %v1041 = vpop.f32.mrf.mxu0
      %v1042 = vadd.f32 %v953, %v1041
      %1043 = vmatmul.bf16.gmra.mxu0 %v531
      %v1044 = vpop.f32.mrf.mxu0
      %v1045 = vadd.f32 %v956, %v1044
      %v1046 = vpop.f32.mrf.mxu0
      %v1047 = vadd.f32 %v958, %v1046
      %1048 = vmatmul.bf16.gmra.mxu0 %v535
      %v1049 = vpop.f32.mrf.mxu0
      %v1050 = vadd.f32 %v961, %v1049
      %v1051 = vpop.f32.mrf.mxu0
      %v1052 = vadd.f32 %v963, %v1051
      %1053 = vmatmul.bf16.gmra.mxu0 %v539
      %v1054 = vpop.f32.mrf.mxu0
      %v1055 = vadd.f32 %v966, %v1054
      %v1056 = vpop.f32.mrf.mxu0
      %v1057 = vadd.f32 %v968, %v1056
      %1058 = vmatmul.bf16.gmra.mxu0 %v543
      %v1059 = vpop.f32.mrf.mxu0
      %v1060 = vadd.f32 %v971, %v1059
      %v1061 = vpop.f32.mrf.mxu0
      %v1062 = vadd.f32 %v973, %v1061
      %1063 = vmatmul.bf16.gmra.mxu0 %v547
      %v1064 = vpop.f32.mrf.mxu0
      %v1065 = vadd.f32 %v976, %v1064
      %v1066 = vpop.f32.mrf.mxu0
      %v1067 = vadd.f32 %v978, %v1066
      %1068 = vmatmul.bf16.gmra.mxu0 %v551
      %v1069 = vpop.f32.mrf.mxu0
      %v1070 = vadd.f32 %v981, %v1069
      %v1071 = vpop.f32.mrf.mxu0
      %v1072 = vadd.f32 %v983, %v1071
      %1073 = vmatmul.bf16.gmra.mxu0 %v555
      %v1074 = vpop.f32.mrf.mxu0
      %v1075 = vadd.f32 %v986, %v1074
      %v1076 = vpop.f32.mrf.mxu0
      %v1077 = vadd.f32 %v988, %v1076
      %1078 = vmatmul.bf16.gmra.mxu0 %v559
      %v1079 = vpop.f32.mrf.mxu0
      %v1080 = vadd.f32 %v991, %v1079
      %v1081 = vpop.f32.mrf.mxu0
      %v1082 = vadd.f32 %v993, %v1081
      %1083 = vdwg.mxu0
      %1084 = vmatpush.bf16.msra.mxu0 %v784
      %1085 = vmatpush.bf16.msra.mxu0 %v783
      %1086 = vmatpush.bf16.msra.mxu0 %v782
      %1087 = vmatpush.bf16.msra.mxu0 %v781
      %1088 = vmatpush.bf16.msra.mxu0 %v780
      %1089 = vmatpush.bf16.msra.mxu0 %v779
      %1090 = vmatpush.bf16.msra.mxu0 %v778
      %1091 = vmatpush.bf16.msra.mxu0 %v777
      %1092 = vmatmul.bf16.gmra.mxu0 %v500
      %v1093 = vpop.f32.mrf.mxu0
      %v1094 = vadd.f32 %v1005, %v1093
      %v1095 = vpop.f32.mrf.mxu0
      %v1096 = vadd.f32 %v1007, %v1095
      %1097 = vmatmul.bf16.gmra.mxu0 %v504
      %v1098 = vpop.f32.mrf.mxu0
      %v1099 = vadd.f32 %v1010, %v1098
      %v1100 = vpop.f32.mrf.mxu0
      %v1101 = vadd.f32 %v1012, %v1100
      %1102 = vmatmul.bf16.gmra.mxu0 %v508
      %v1103 = vpop.f32.mrf.mxu0
      %v1104 = vadd.f32 %v1015, %v1103
      %v1105 = vpop.f32.mrf.mxu0
      %v1106 = vadd.f32 %v1017, %v1105
      %1107 = vmatmul.bf16.gmra.mxu0 %v512
      %v1108 = vpop.f32.mrf.mxu0
      %v1109 = vadd.f32 %v1020, %v1108
      %v1110 = vpop.f32.mrf.mxu0
      %v1111 = vadd.f32 %v1022, %v1110
      %1112 = vmatmul.bf16.gmra.mxu0 %v516
      %v1113 = vpop.f32.mrf.mxu0
      %v1114 = vadd.f32 %v1025, %v1113
      %v1115 = vpop.f32.mrf.mxu0
      %v1116 = vadd.f32 %v1027, %v1115
      %1117 = vmatmul.bf16.gmra.mxu0 %v520
      %v1118 = vpop.f32.mrf.mxu0
      %v1119 = vadd.f32 %v1030, %v1118
      %v1120 = vpop.f32.mrf.mxu0
      %v1121 = vadd.f32 %v1032, %v1120
      %1122 = vmatmul.bf16.gmra.mxu0 %v524
      %v1123 = vpop.f32.mrf.mxu0
      %v1124 = vadd.f32 %v1035, %v1123
      %v1125 = vpop.f32.mrf.mxu0
      %v1126 = vadd.f32 %v1037, %v1125
      %1127 = vmatmul.bf16.gmra.mxu0 %v528
      %v1128 = vpop.f32.mrf.mxu0
      %v1129 = vadd.f32 %v1040, %v1128
      %v1130 = vpop.f32.mrf.mxu0
      %v1131 = vadd.f32 %v1042, %v1130
      %1132 = vmatmul.bf16.gmra.mxu0 %v532
      %v1133 = vpop.f32.mrf.mxu0
      %v1134 = vadd.f32 %v1045, %v1133
      %v1135 = vpop.f32.mrf.mxu0
      %v1136 = vadd.f32 %v1047, %v1135
      %1137 = vmatmul.bf16.gmra.mxu0 %v536
      %v1138 = vpop.f32.mrf.mxu0
      %v1139 = vadd.f32 %v1050, %v1138
      %v1140 = vpop.f32.mrf.mxu0
      %v1141 = vadd.f32 %v1052, %v1140
      %1142 = vmatmul.bf16.gmra.mxu0 %v540
      %v1143 = vpop.f32.mrf.mxu0
      %v1144 = vadd.f32 %v1055, %v1143
      %v1145 = vpop.f32.mrf.mxu0
      %v1146 = vadd.f32 %v1057, %v1145
      %1147 = vmatmul.bf16.gmra.mxu0 %v544
      %v1148 = vpop.f32.mrf.mxu0
      %v1149 = vadd.f32 %v1060, %v1148
      %v1150 = vpop.f32.mrf.mxu0
      %v1151 = vadd.f32 %v1062, %v1150
      %1152 = vmatmul.bf16.gmra.mxu0 %v548
      %v1153 = vpop.f32.mrf.mxu0
      %v1154 = vadd.f32 %v1065, %v1153
      %v1155 = vpop.f32.mrf.mxu0
      %v1156 = vadd.f32 %v1067, %v1155
      %1157 = vmatmul.bf16.gmra.mxu0 %v552
      %v1158 = vpop.f32.mrf.mxu0
      %v1159 = vadd.f32 %v1070, %v1158
      %v1160 = vpop.f32.mrf.mxu0
      %v1161 = vadd.f32 %v1072, %v1160
      %1162 = vmatmul.bf16.gmra.mxu0 %v556
      %v1163 = vpop.f32.mrf.mxu0
      %v1164 = vadd.f32 %v1075, %v1163
      %v1165 = vpop.f32.mrf.mxu0
      %v1166 = vadd.f32 %v1077, %v1165
      %1167 = vmatmul.bf16.gmra.mxu0 %v560
      %v1168 = vpop.f32.mrf.mxu0
      %v1169 = vadd.f32 %v1080, %v1168
      %v1170 = vpop.f32.mrf.mxu0
      %v1171 = vadd.f32 %v1082, %v1170
      %1172 = vdwg.mxu0
      %v1173 = vmax.f32 %v1094, 0.0
      %v1174 = vmax.f32 %v1096, 0.0
      %v1175 = vmax.f32 %v1099, 0.0
      %v1176 = vmax.f32 %v1101, 0.0
      %v1177 = vmax.f32 %v1104, 0.0
      %v1178 = vmax.f32 %v1106, 0.0
      %v1179 = vmax.f32 %v1109, 0.0
      %v1180 = vmax.f32 %v1111, 0.0
      %v1181 = vmax.f32 %v1114, 0.0
      %v1182 = vmax.f32 %v1116, 0.0
      %v1183 = vmax.f32 %v1119, 0.0
      %v1184 = vmax.f32 %v1121, 0.0
      %v1185 = vmax.f32 %v1124, 0.0
      %v1186 = vmax.f32 %v1126, 0.0
      %v1187 = vmax.f32 %v1129, 0.0
      %v1188 = vmax.f32 %v1131, 0.0
      %v1189 = vmax.f32 %v1134, 0.0
      %v1190 = vmax.f32 %v1136, 0.0
      %v1191 = vmax.f32 %v1139, 0.0
      %v1192 = vmax.f32 %v1141, 0.0
      %v1193 = vmax.f32 %v1144, 0.0
      %v1194 = vmax.f32 %v1146, 0.0
      %v1195 = vmax.f32 %v1149, 0.0
      %v1196 = vmax.f32 %v1151, 0.0
      %v1197 = vmax.f32 %v1154, 0.0
      %v1198 = vmax.f32 %v1156, 0.0
      %v1199 = vmax.f32 %v1159, 0.0
      %v1200 = vmax.f32 %v1161, 0.0
      %v1201 = vmax.f32 %v1164, 0.0
      %v1202 = vmax.f32 %v1166, 0.0
      %v1203 = vmax.f32 %v1169, 0.0
      %v1204 = vmax.f32 %v1171, 0.0
      %v1205 = vpack.c.bf16 %v1174, %v1173
      %v1206 = vpack.c.bf16 %v1176, %v1175
      %v1207 = vpack.c.bf16 %v1178, %v1177
      %v1208 = vpack.c.bf16 %v1180, %v1179
      %v1209 = vpack.c.bf16 %v1182, %v1181
      %v1210 = vpack.c.bf16 %v1184, %v1183
      %v1211 = vpack.c.bf16 %v1186, %v1185
      %v1212 = vpack.c.bf16 %v1188, %v1187
      %v1213 = vpack.c.bf16 %v1190, %v1189
      %v1214 = vpack.c.bf16 %v1192, %v1191
      %v1215 = vpack.c.bf16 %v1194, %v1193
      %v1216 = vpack.c.bf16 %v1196, %v1195
      %v1217 = vpack.c.bf16 %v1198, %v1197
      %v1218 = vpack.c.bf16 %v1200, %v1199
      %v1219 = vpack.c.bf16 %v1202, %v1201
      %v1220 = vpack.c.bf16 %v1204, %v1203
      %v1221 = vld [vmem:[%s2] sm:$0xf]
      %v1222 = vld [vmem:[%s2 + $0x4] sm:$0xf]
      %v1223 = vld [vmem:[%s2 + $0x8] sm:$0xf]
      %v1224 = vld [vmem:[%s2 + $0xc] sm:$0xf]
      %v1225 = vld [vmem:[%s2 + $0x10] sm:$0xf]
      %v1226 = vld [vmem:[%s2 + $0x14] sm:$0xf]
      %v1227 = vld [vmem:[%s2 + $0x18] sm:$0xf]
      %v1228 = vld [vmem:[%s2 + $0x1c] sm:$0xf]
      %v1229 = vld [vmem:[%s2 + $0x20] sm:$0xf]
      %v1230 = vld [vmem:[%s2 + $0x24] sm:$0xf]
      %v1231 = vld [vmem:[%s2 + $0x28] sm:$0xf]
      %v1232 = vld [vmem:[%s2 + $0x2c] sm:$0xf]
      %v1233 = vld [vmem:[%s2 + $0x30] sm:$0xf]
      %v1234 = vld [vmem:[%s2 + $0x34] sm:$0xf]
      %v1235 = vld [vmem:[%s2 + $0x38] sm:$0xf]
      %v1236 = vld [vmem:[%s2 + $0x3c] sm:$0xf]
      %v1253 = vunpack.c.l.b16 %v1221
      %v1254 = vunpack.c.l.b16 %v1222
      %v1255 = vunpack.c.l.b16 %v1223
      %v1256 = vunpack.c.l.b16 %v1224
      %v1257 = vunpack.c.l.b16 %v1225
      %v1258 = vunpack.c.l.b16 %v1226
      %v1259 = vunpack.c.l.b16 %v1227
      %v1260 = vunpack.c.l.b16 %v1228
      %v1261 = vunpack.c.l.b16 %v1229
      %v1262 = vunpack.c.l.b16 %v1230
      %v1263 = vunpack.c.l.b16 %v1231
      %v1264 = vunpack.c.l.b16 %v1232
      %v1265 = vunpack.c.l.b16 %v1233
      %v1266 = vunpack.c.l.b16 %v1234
      %v1267 = vunpack.c.l.b16 %v1235
      %v1268 = vunpack.c.l.b16 %v1236
      %v1269 = vpack.c.b16 %v1254, %v1253
      %v1270 = vpack.c.b16 %v1256, %v1255
      %v1271 = vpack.c.b16 %v1258, %v1257
      %v1272 = vpack.c.b16 %v1260, %v1259
      %v1273 = vpack.c.b16 %v1262, %v1261
      %v1274 = vpack.c.b16 %v1264, %v1263
      %v1275 = vpack.c.b16 %v1266, %v1265
      %v1276 = vpack.c.b16 %v1268, %v1267
      %1285 = vmatpush.bf16.msra.mxu0 %v1276
      %1286 = vmatpush.bf16.msra.mxu0 %v1275
      %1287 = vmatpush.bf16.msra.mxu0 %v1274
      %1288 = vmatpush.bf16.msra.mxu0 %v1273
      %1289 = vmatpush.bf16.msra.mxu0 %v1272
      %1290 = vmatpush.bf16.msra.mxu0 %v1271
      %1291 = vmatpush.bf16.msra.mxu0 %v1270
      %1292 = vmatpush.bf16.msra.mxu0 %v1269
      %1293 = vmatmul.bf16.gmra.mxu0 %v1205
      %v1294 = vpop.f32.mrf.mxu0
      %v1295 = vadd.f32 0.0, %v1294
      %v1296 = vpop.f32.mrf.mxu0
      %v1297 = vadd.f32 0.0, %v1296
      %1298 = vmatmul.bf16.gmra.mxu0 %v1206
      %v1299 = vpop.f32.mrf.mxu0
      %v1300 = vadd.f32 0.0, %v1299
      %v1301 = vpop.f32.mrf.mxu0
      %v1302 = vadd.f32 0.0, %v1301
      %1303 = vmatmul.bf16.gmra.mxu0 %v1207
      %v1304 = vpop.f32.mrf.mxu0
      %v1305 = vadd.f32 0.0, %v1304
      %v1306 = vpop.f32.mrf.mxu0
      %v1307 = vadd.f32 0.0, %v1306
      %1308 = vmatmul.bf16.gmra.mxu0 %v1208
      %v1309 = vpop.f32.mrf.mxu0
      %v1310 = vadd.f32 0.0, %v1309
      %v1311 = vpop.f32.mrf.mxu0
      %v1312 = vadd.f32 0.0, %v1311
      %1313 = vmatmul.bf16.gmra.mxu0 %v1209
      %v1314 = vpop.f32.mrf.mxu0
      %v1315 = vadd.f32 0.0, %v1314
      %v1316 = vpop.f32.mrf.mxu0
      %v1317 = vadd.f32 0.0, %v1316
      %1318 = vmatmul.bf16.gmra.mxu0 %v1210
      %v1319 = vpop.f32.mrf.mxu0
      %v1320 = vadd.f32 0.0, %v1319
      %v1321 = vpop.f32.mrf.mxu0
      %v1322 = vadd.f32 0.0, %v1321
      %1323 = vmatmul.bf16.gmra.mxu0 %v1211
      %v1324 = vpop.f32.mrf.mxu0
      %v1325 = vadd.f32 0.0, %v1324
      %v1326 = vpop.f32.mrf.mxu0
      %v1327 = vadd.f32 0.0, %v1326
      %1328 = vmatmul.bf16.gmra.mxu0 %v1212
      %v1329 = vpop.f32.mrf.mxu0
      %v1330 = vadd.f32 0.0, %v1329
      %v1331 = vpop.f32.mrf.mxu0
      %v1332 = vadd.f32 0.0, %v1331
      %1333 = vmatmul.bf16.gmra.mxu0 %v1213
      %v1334 = vpop.f32.mrf.mxu0
      %v1335 = vadd.f32 0.0, %v1334
      %v1336 = vpop.f32.mrf.mxu0
      %v1337 = vadd.f32 0.0, %v1336
      %1338 = vmatmul.bf16.gmra.mxu0 %v1214
      %v1339 = vpop.f32.mrf.mxu0
      %v1340 = vadd.f32 0.0, %v1339
      %v1341 = vpop.f32.mrf.mxu0
      %v1342 = vadd.f32 0.0, %v1341
      %1343 = vmatmul.bf16.gmra.mxu0 %v1215
      %v1344 = vpop.f32.mrf.mxu0
      %v1345 = vadd.f32 0.0, %v1344
      %v1346 = vpop.f32.mrf.mxu0
      %v1347 = vadd.f32 0.0, %v1346
      %1348 = vmatmul.bf16.gmra.mxu0 %v1216
      %v1349 = vpop.f32.mrf.mxu0
      %v1350 = vadd.f32 0.0, %v1349
      %v1351 = vpop.f32.mrf.mxu0
      %v1352 = vadd.f32 0.0, %v1351
      %1353 = vmatmul.bf16.gmra.mxu0 %v1217
      %v1354 = vpop.f32.mrf.mxu0
      %v1355 = vadd.f32 0.0, %v1354
      %v1356 = vpop.f32.mrf.mxu0
      %v1357 = vadd.f32 0.0, %v1356
      %1358 = vmatmul.bf16.gmra.mxu0 %v1218
      %v1359 = vpop.f32.mrf.mxu0
      %v1360 = vadd.f32 0.0, %v1359
      %v1361 = vpop.f32.mrf.mxu0
      %v1362 = vadd.f32 0.0, %v1361
      %1363 = vmatmul.bf16.gmra.mxu0 %v1219
      %v1364 = vpop.f32.mrf.mxu0
      %v1365 = vadd.f32 0.0, %v1364
      %v1366 = vpop.f32.mrf.mxu0
      %v1367 = vadd.f32 0.0, %v1366
      %1368 = vmatmul.bf16.gmra.mxu0 %v1220
      %v1369 = vpop.f32.mrf.mxu0
      %v1370 = vadd.f32 0.0, %v1369
      %v1371 = vpop.f32.mrf.mxu0
      %v1372 = vadd.f32 0.0, %v1371
      %1373 = vdwg.mxu0
      %v1374 = vpack.c.bf16 %v1295, %v1295
      %v1375 = vpack.c.bf16 %v1297, %v1297
      %v1376 = vpack.c.bf16 %v1300, %v1300
      %v1377 = vpack.c.bf16 %v1302, %v1302
      %v1378 = vpack.c.bf16 %v1305, %v1305
      %v1379 = vpack.c.bf16 %v1307, %v1307
      %v1380 = vpack.c.bf16 %v1310, %v1310
      %v1381 = vpack.c.bf16 %v1312, %v1312
      %v1382 = vpack.c.bf16 %v1315, %v1315
      %v1383 = vpack.c.bf16 %v1317, %v1317
      %v1384 = vpack.c.bf16 %v1320, %v1320
      %v1385 = vpack.c.bf16 %v1322, %v1322
      %v1386 = vpack.c.bf16 %v1325, %v1325
      %v1387 = vpack.c.bf16 %v1327, %v1327
      %v1388 = vpack.c.bf16 %v1330, %v1330
      %v1389 = vpack.c.bf16 %v1332, %v1332
      %v1390 = vpack.c.bf16 %v1335, %v1335
      %v1391 = vpack.c.bf16 %v1337, %v1337
      %v1392 = vpack.c.bf16 %v1340, %v1340
      %v1393 = vpack.c.bf16 %v1342, %v1342
      %v1394 = vpack.c.bf16 %v1345, %v1345
      %v1395 = vpack.c.bf16 %v1347, %v1347
      %v1396 = vpack.c.bf16 %v1350, %v1350
      %v1397 = vpack.c.bf16 %v1352, %v1352
      %v1398 = vpack.c.bf16 %v1355, %v1355
      %v1399 = vpack.c.bf16 %v1357, %v1357
      %v1400 = vpack.c.bf16 %v1360, %v1360
      %v1401 = vpack.c.bf16 %v1362, %v1362
      %v1402 = vpack.c.bf16 %v1365, %v1365
      %v1403 = vpack.c.bf16 %v1367, %v1367
      %v1404 = vpack.c.bf16 %v1370, %v1370
      %v1405 = vpack.c.bf16 %v1372, %v1372
      %1406 = vst [vmem:[%s175] sm:$0xf] %v1374
      %1407 = vst [vmem:[%s175 + $0x4] sm:$0xf] %v1375
      %1408 = vst [vmem:[%s175 + $0x8] sm:$0xf] %v1376
      %1409 = vst [vmem:[%s175 + $0xc] sm:$0xf] %v1377
      %1410 = vst [vmem:[%s175 + $0x10] sm:$0xf] %v1378
      %1411 = vst [vmem:[%s175 + $0x14] sm:$0xf] %v1379
      %1412 = vst [vmem:[%s175 + $0x18] sm:$0xf] %v1380
      %1413 = vst [vmem:[%s175 + $0x1c] sm:$0xf] %v1381
      %1414 = vst [vmem:[%s175 + $0x20] sm:$0xf] %v1382
      %1415 = vst [vmem:[%s175 + $0x24] sm:$0xf] %v1383
      %1416 = vst [vmem:[%s175 + $0x28] sm:$0xf] %v1384
      %1417 = vst [vmem:[%s175 + $0x2c] sm:$0xf] %v1385
      %1418 = vst [vmem:[%s175 + $0x30] sm:$0xf] %v1386
      %1419 = vst [vmem:[%s175 + $0x34] sm:$0xf] %v1387
      %1420 = vst [vmem:[%s175 + $0x38] sm:$0xf] %v1388
      %1421 = vst [vmem:[%s175 + $0x3c] sm:$0xf] %v1389
      %1422 = vst [vmem:[%s175 + $0x40] sm:$0xf] %v1390
      %1423 = vst [vmem:[%s175 + $0x44] sm:$0xf] %v1391
      %1424 = vst [vmem:[%s175 + $0x48] sm:$0xf] %v1392
      %1425 = vst [vmem:[%s175 + $0x4c] sm:$0xf] %v1393
      %1426 = vst [vmem:[%s175 + $0x50] sm:$0xf] %v1394
      %1427 = vst [vmem:[%s175 + $0x54] sm:$0xf] %v1395
      %1428 = vst [vmem:[%s175 + $0x58] sm:$0xf] %v1396
      %1429 = vst [vmem:[%s175 + $0x5c] sm:$0xf] %v1397
      %1430 = vst [vmem:[%s175 + $0x60] sm:$0xf] %v1398
      %1431 = vst [vmem:[%s175 + $0x64] sm:$0xf] %v1399
      %1432 = vst [vmem:[%s175 + $0x68] sm:$0xf] %v1400
      %1433 = vst [vmem:[%s175 + $0x6c] sm:$0xf] %v1401
      %1434 = vst [vmem:[%s175 + $0x70] sm:$0xf] %v1402
      %1435 = vst [vmem:[%s175 + $0x74] sm:$0xf] %v1403
      %1436 = vst [vmem:[%s175 + $0x78] sm:$0xf] %v1404
      %1437 = vst [vmem:[%s175 + $0x7c] sm:$0xf] %v1405
      %s1438 = smul.u32 32, %s14
      %p1439 = scmp.lt.s32.totalorder %s1438, 63
      %s1440 = scalar_select %p1439, %s1438, 63
      %s1441 = smul.addr %s1440, 4
      %s1442 = scalar_lea.vmem %s3, %s1441
      // Predicated region
      $region33: #{gcn_forward.2} parent=31 // pred_check
        %p1443 = pneg %p100
      $region34: #{gcn_forward.2} parent=31 // pred_check_branch
        %1445 = sbr.rel (%p1443) target = $region36
      $region35: #{gcn_forward.2} parent=31 // pred_region
        %s1446 = smul.u32 32, %s14
      $region36: #{gcn_forward.2} parent=31 // pred_fallthru
        _
    $region32: #{gcn_forward.2} parent=5 // pred_fallthru
      _
    %p1447 = scmp.le.s32.totalorder 2, %s9
    // Predicated region
    $region37: #{gcn_forward.2} parent=5 // pred_check
      %p1448 = pneg %p1447
    $region38: #{gcn_forward.2} parent=5 // pred_check_branch
      %1450 = sbr.rel (%p1448) target = $region40
    $region39: #{gcn_forward.2} parent=5 // pred_region
      %s1451 = ssub.s32 %s9, 2
      // Predicated region
      $region41: #{gcn_forward.2} parent=39 // pred_check
        %p1452 = pneg %p106
      $region42: #{gcn_forward.2} parent=39 // pred_check_branch
        %1454 = sbr.rel (%p1452) target = $region44
      $region43: #{gcn_forward.2} parent=39 // pred_region
        %s1455 = smul.u32 32, %s15
        %p1456 = scmp.lt.s32.totalorder %s1455, 63
        %s1457 = scalar_select %p1456, %s1455, 63
        %s1458 = smul.addr %s1457, 4
        %s1459 = scalar_lea.vmem %s3, %s1458
      $region44: #{gcn_forward.2} parent=39 // pred_fallthru
        _
    $region40: #{gcn_forward.2} parent=5 // pred_fallthru
      _
  $region6: #{gcn_forward.2} parent=0 // loop_footer
    %s13 = sadd.s32 1, %s9
  $region7: #{gcn_forward.2} parent=0 // loop_footer_branch
    %8 = sbr.rel target = $region3
  $region8: #{gcn_forward.2} parent=0 // loop_exit
    _

</llo_original>
